<compile_context>
chip_gen: v7x
topology: tpu7x:2x2x1
jax: 0.10.0
libtpu: 0.0.40
codegen_flags: <defaults>
</compile_context>

<pallas_src>
import functools

import numpy as np
import jax
import jax.numpy as jnp
from jax.experimental import pallas as pl
from jax.experimental.pallas import tpu as pltpu


# ----------------------------- activations -----------------------------------
def _relu(x):
    return jnp.maximum(x, 0.0)


def _elu(x):
    # ELU(alpha=1): x if x > 0 else exp(x) - 1   (clamp exp arg for safety)
    return jnp.where(x > 0, x, jnp.exp(jnp.minimum(x, 0.0)) - 1.0)


_ACTS = {"relu": _relu, "elu": _elu, "none": lambda x: x}


# -------------------- border-validity masks for the 3x3 taps -----------------
def _make_valid_masks(h, w, b_tile):
    """(9, 1, b_tile*h*w) f32 masks: 1.0 where tap (dy, dx) reads inside its image.

    With the batch folded onto the lane axis, a tap that would read across an
    image boundary is exactly a tap that reads outside its own image's bounds,
    so the per-image mask (tiled b_tile times) also kills cross-image wraps.
    """
    hw = h * w
    hh, ww = np.meshgrid(np.arange(h), np.arange(w), indexing="ij")
    hh = hh.reshape(-1)
    ww = ww.reshape(-1)
    m = np.zeros((9, 1, hw), np.float32)
    for dy in range(3):
        for dx in range(3):
            ok = ((hh + dy - 1 >= 0) & (hh + dy - 1 < h) &
                  (ww + dx - 1 >= 0) & (ww + dx - 1 < w))
            m[dy * 3 + dx, 0, :] = ok.astype(np.float32)
    return jnp.asarray(np.tile(m, (1, 1, b_tile)))


# ------------------------------ fused kernel ----------------------------------
def _cpm_kernel(x_ref, aw_ref, ab_ref, dwm_ref, pw_ref, cw_ref, valid_ref,
                o_ref, stk_ref, *, W, Cout):
    f32 = jnp.float32
    x = x_ref[0]                                    # (Cin, LANE) channel-major
    LANE = x.shape[-1]

    # masked-roll padding trick: 3x3 / stride-1 / dilation-1 only.
    def tap_roll(v, tap):
        dy, dx = tap // 3, tap % 3
        off = (dy - 1) * W + (dx - 1)
        if off == 0:
            return v                                # center tap, no shift
        return pltpu.roll(v, (-off) % LANE, 1)      # lane rotation (XLU slot)

    # --- align: 1x1 conv + bias + ReLU  ->  a : (Cout, LANE) ------------------
    a = _relu(jnp.dot(aw_ref[...], x, preferred_element_type=f32) + ab_ref[...])

    # --- trunk: 3 x [depthwise 3x3 (no bias) + ELU, pointwise 1x1 (no bias) + ELU]
    # Border masks are pre-folded into dwm; taps are streamed (roll -> fma).
    t = a
    for layer in range(3):
        acc = t * dwm_ref[layer, 4]                 # center tap (always valid)
        for tap in range(9):
            if tap == 4:
                continue
            acc = acc + tap_roll(t, tap) * dwm_ref[layer, tap]
        t = _elu(acc)
        t = _elu(jnp.dot(pw_ref[layer], t, preferred_element_type=f32))

    # --- residual add + final 3x3 conv + bias + ReLU --------------------------
    # Stream the 9 masked taps of s into a (9*Cout+1, LANE) VMEM stack (last
    # row = ones so the bias rides the contraction), then ONE K=9*Cout+1 matmul.
    s = a + t
    for tap in range(9):
        sv = tap_roll(s, tap)
        if tap != 4:
            sv = sv * valid_ref[tap]
        stk_ref[tap * Cout:(tap + 1) * Cout, :] = sv
    stk_ref[9 * Cout:, :] = jnp.ones((1, LANE), f32)
    y = jnp.dot(cw_ref[...], stk_ref[...], preferred_element_type=f32)
    o_ref[0] = _relu(y).astype(o_ref.dtype)         # (Cout, LANE), lane-dense store


# ------------------------------ Cpm forward -----------------------------------
def _pick_b_tile(n, h, w):
    """Images per grid step (batch rides the lane axis).  Keep >= 2 grid steps
    for v7x's two TensorCores; cap the lane width for vreg pressure."""
    max_lanes = 2048                      # (Cout, max_lanes) f32 = 16 vregs / tile
    cap = max(1, max_lanes // (h * w))
    best = 1
    for c in range(1, min(n, cap) + 1):
        if n % c == 0 and n // c >= 2:
            best = c
    return best


def cpm_forward(x_nchw, params, b_tile=None):
    n, cin, h, w = x_nchw.shape
    cout = params["align_w"].shape[1]
    hw = h * w
    # roll-based zero padding needs the per-image lane span on vreg boundaries
    assert hw % 128 == 0, "H*W must be a multiple of 128 for the lane-roll taps"

    if b_tile is None:
        b_tile = _pick_b_tile(n, h, w)
    assert n % b_tile == 0
    nb = n // b_tile
    lane = b_tile * hw

    # layout plumbing (metadata-only when b_tile == 1: NCHW is channel-major)
    x2 = (x_nchw.reshape(nb, b_tile, cin, hw)
                .transpose(0, 2, 1, 3)
                .reshape(nb, cin, lane))

    # ---- weight prep (tiny, one-time XLA ops) --------------------------------
    valid = _make_valid_masks(h, w, b_tile)                              # (9, 1, lane)
    aw_t = params["align_w"].T.astype(jnp.float32)                       # (cout, cin)
    ab = params["align_b"].reshape(cout, 1)                              # (cout, 1)
    dw_all = jnp.stack([params[f"dw{i}_w"].reshape(9, cout)
                        for i in range(3)], axis=0)                      # (3, 9, cout)
    dwm = dw_all[:, :, :, None] * valid[None, :, :, :]                   # (3, 9, cout, lane)
    pw_t = jnp.stack([params[f"pw{i}_w"].T for i in range(3)], axis=0)   # (3, cout, cout)
    cw_t = jnp.transpose(params["conv_w"], (0, 1, 3, 2)).reshape(9, cout, cout)
    cw2 = jnp.transpose(cw_t, (1, 0, 2)).reshape(cout, 9 * cout)         # (cout, 9*cout)
    cw2 = jnp.concatenate([cw2, params["conv_b"].reshape(cout, 1)], 1)   # (cout, 9*cout+1)

    flops = n * hw * (2 * cout * cin                        # align 1x1
                      + 3 * (18 * cout + 2 * cout * cout)   # trunk dw + pw
                      + cout                                # residual add
                      + 2 * cout * (9 * cout + 1))          # final 3x3 (stacked)
    bytes_accessed = 4 * (x2.size + nb * cout * lane + aw_t.size + ab.size
                          + dwm.size + pw_t.size + cw2.size + valid.size)
    cost = pl.CostEstimate(flops=flops,
                           transcendentals=6 * n * cout * hw,
                           bytes_accessed=bytes_accessed)

    out = pl.pallas_call(
        functools.partial(_cpm_kernel, W=w, Cout=cout),
        out_shape=jax.ShapeDtypeStruct((nb, cout, lane), jnp.float32),
        grid_spec=pltpu.PrefetchScalarGridSpec(
            num_scalar_prefetch=0,
            grid=(nb,),
            in_specs=[
                pl.BlockSpec((1, cin, lane), lambda b: (b, 0, 0)),
                pl.BlockSpec((cout, cin), lambda b: (0, 0)),
                pl.BlockSpec((cout, 1), lambda b: (0, 0)),
                pl.BlockSpec((3, 9, cout, lane), lambda b: (0, 0, 0, 0)),
                pl.BlockSpec((3, cout, cout), lambda b: (0, 0, 0)),
                pl.BlockSpec((cout, 9 * cout + 1), lambda b: (0, 0)),
                pl.BlockSpec((9, 1, lane), lambda b: (0, 0, 0)),
            ],
            out_specs=pl.BlockSpec((1, cout, lane), lambda b: (b, 0, 0)),
            scratch_shapes=[pltpu.VMEM((9 * cout + 1, lane), jnp.float32)],
        ),
        compiler_params=pltpu.CompilerParams(dimension_semantics=("parallel",)),
        cost_estimate=cost,
    )(x2, aw_t, ab, dwm, pw_t, cw2, valid)

    return (out.reshape(nb, cout, b_tile, hw)
               .transpose(0, 2, 1, 3)
               .reshape(n, cout, h, w))


# ------------------------------ parameters ------------------------------------
def init_params(key, cin, cout):
    ks = jax.random.split(key, 16)
    p = {
        "align_w": 0.2 * jax.random.normal(ks[0], (cin, cout), jnp.float32),
        "align_b": 0.1 * jax.random.normal(ks[1], (cout,), jnp.float32),
        "conv_w": 0.1 * jax.random.normal(ks[2], (3, 3, cout, cout), jnp.float32),
        "conv_b": 0.1 * jax.random.normal(ks[3], (cout,), jnp.float32),
    }
    for i in range(3):
        p[f"dw{i}_w"] = 0.2 * jax.random.normal(ks[4 + 2 * i], (3, 3, cout), jnp.float32)
        p[f"pw{i}_w"] = 0.2 * jax.random.normal(ks[5 + 2 * i], (cout, cout), jnp.float32)
    return p


# ---------------------------- pure-JAX reference ------------------------------
def ref_forward(x_nhwc, params):
    dn = ("NHWC", "HWIO", "NHWC")

    def pw(x, w_io, b, act):
        w = w_io.reshape(1, 1, *w_io.shape)
        y = jax.lax.conv_general_dilated(x, w, (1, 1), "VALID",
                                         dimension_numbers=dn) + b
        return _ACTS[act](y)

    def dw(x, w_hwc):
        c = x.shape[-1]
        w = w_hwc.reshape(3, 3, 1, c)
        y = jax.lax.conv_general_dilated(x, w, (1, 1), ((1, 1), (1, 1)),
                                         dimension_numbers=dn,
                                         feature_group_count=c)
        return _elu(y)

    cout = params["align_w"].shape[1]
    a = pw(x_nhwc, params["align_w"], params["align_b"], "relu")
    t = a
    zb = jnp.zeros((cout,), jnp.float32)
    for i in range(3):
        t = dw(t, params[f"dw{i}_w"])
        t = pw(t, params[f"pw{i}_w"], zb, "elu")
    s = a + t
    y = jax.lax.conv_general_dilated(s, params["conv_w"], (1, 1),
                                     ((1, 1), (1, 1)),
                                     dimension_numbers=dn) + params["conv_b"]
    return _relu(y)


if __name__ == "__main__":
    in_channels, out_channels = 4, 8
    N, H, W = 2, 16, 16

    key = jax.random.PRNGKey(0)
    k_x, k_p = jax.random.split(key)
    # PyTorch-style NCHW input — the fused kernel consumes NCHW natively.
    x_nchw = jax.random.normal(k_x, (N, in_channels, H, W), jnp.float32)
    params = init_params(k_p, in_channels, out_channels)

    out_nchw = cpm_forward(x_nchw, params)
    out_nchw = jax.block_until_ready(out_nchw)
    assert out_nchw.shape == (N, out_channels, H, W), out_nchw.shape

    # reference (NHWC) for numerical check
    x_nhwc = jnp.transpose(x_nchw, (0, 2, 3, 1))
    ref_nhwc = ref_forward(x_nhwc, params)
    out_nhwc = jnp.transpose(out_nchw, (0, 2, 3, 1))
    err = float(jnp.max(jnp.abs(out_nhwc - ref_nhwc)))
    assert jnp.allclose(out_nhwc, ref_nhwc, atol=1e-4, rtol=1e-4), f"max abs err {err}"

    print("KERNEL_OK")
</pallas_src>

<mosaic_0001>
module attributes {stable_mosaic.version = 11 : i64} {
  func.func @_cpm_kernel(%arg0: i32, %arg1: memref<1x4x256xf32, #tpu.memory_space<vmem>>, %arg2: memref<8x4xf32, #tpu.memory_space<vmem>>, %arg3: memref<8x1xf32, #tpu.memory_space<vmem>>, %arg4: memref<3x9x8x256xf32, #tpu.memory_space<vmem>>, %arg5: memref<3x8x8xf32, #tpu.memory_space<vmem>>, %arg6: memref<8x73xf32, #tpu.memory_space<vmem>>, %arg7: memref<9x1x256xf32, #tpu.memory_space<vmem>>, %arg8: memref<1x8x256xf32, #tpu.memory_space<vmem>>, %arg9: memref<73x256xf32, #tpu.memory_space<vmem>>) attributes {dimension_semantics = [#tpu.dimension_semantics<parallel>], iteration_bounds = array<i64: 2>, scalar_prefetch = 0 : i64, scratch_operands = 1 : i64, tpu.core_type = #tpu.core_type<tc>, window_params = [{transform_indices = @transform_0, window_bounds = array<i64: 1, 4, 256>}, {pipeline_mode = #tpu.pipeline_mode<synchronous>, transform_indices = @transform_1, window_bounds = array<i64: 8, 4>}, {pipeline_mode = #tpu.pipeline_mode<synchronous>, transform_indices = @transform_2, window_bounds = array<i64: 8, 1>}, {pipeline_mode = #tpu.pipeline_mode<synchronous>, transform_indices = @transform_3, window_bounds = array<i64: 3, 9, 8, 256>}, {pipeline_mode = #tpu.pipeline_mode<synchronous>, transform_indices = @transform_4, window_bounds = array<i64: 3, 8, 8>}, {pipeline_mode = #tpu.pipeline_mode<synchronous>, transform_indices = @transform_5, window_bounds = array<i64: 8, 73>}, {pipeline_mode = #tpu.pipeline_mode<synchronous>, transform_indices = @transform_6, window_bounds = array<i64: 9, 1, 256>}, {transform_indices = @transform_7, window_bounds = array<i64: 1, 8, 256>}]} {
    %c0 = arith.constant 0 : index
    %c0_0 = arith.constant 0 : index
    %c0_1 = arith.constant 0 : index
    %0 = vector.load %arg1[%c0, %c0_0, %c0_1] : memref<1x4x256xf32, #tpu.memory_space<vmem>>, vector<1x4x256xf32>
    %1 = vector.shape_cast %0 : vector<1x4x256xf32> to vector<4x256xf32>
    %c0_2 = arith.constant 0 : index
    %c0_3 = arith.constant 0 : index
    %2 = vector.load %arg2[%c0_2, %c0_3] : memref<8x4xf32, #tpu.memory_space<vmem>>, vector<8x4xf32>
    %cst = arith.constant dense<0.000000e+00> : vector<8x256xf32>
    %3 = tpu.matmul %2, %1, %cst {dimension_numbers = #tpu.dot_dimension_numbers<[1], [0], [0], [1], [0, 0, 1, 1], [], []>} : vector<8x4xf32>, vector<4x256xf32>, vector<8x256xf32> -> vector<8x256xf32>
    %c0_4 = arith.constant 0 : index
    %c0_5 = arith.constant 0 : index
    %4 = vector.load %arg3[%c0_4, %c0_5] : memref<8x1xf32, #tpu.memory_space<vmem>>, vector<8x1xf32>
    %5 = vector.broadcast %4 : vector<8x1xf32> to vector<8x256xf32>
    %6 = arith.addf %3, %5 : vector<8x256xf32>
    %cst_6 = arith.constant 0.000000e+00 : f32
    %7 = vector.broadcast %cst_6 : f32 to vector<8x256xf32>
    %8 = arith.maximumf %6, %7 : vector<8x256xf32>
    %c0_7 = arith.constant 0 : index
    %c4 = arith.constant 4 : index
    %c0_8 = arith.constant 0 : index
    %c0_9 = arith.constant 0 : index
    %9 = vector.load %arg4[%c0_7, %c4, %c0_8, %c0_9] : memref<3x9x8x256xf32, #tpu.memory_space<vmem>>, vector<1x1x8x256xf32>
    %10 = vector.shape_cast %9 : vector<1x1x8x256xf32> to vector<8x256xf32>
    %11 = arith.mulf %8, %10 : vector<8x256xf32>
    %c17_i32 = arith.constant 17 : i32
    %12 = tpu.dynamic_rotate %8 by %c17_i32 dim 1 : vector<8x256xf32>, i32 -> vector<8x256xf32>
    %c0_10 = arith.constant 0 : index
    %c0_11 = arith.constant 0 : index
    %c0_12 = arith.constant 0 : index
    %c0_13 = arith.constant 0 : index
    %13 = vector.load %arg4[%c0_10, %c0_11, %c0_12, %c0_13] : memref<3x9x8x256xf32, #tpu.memory_space<vmem>>, vector<1x1x8x256xf32>
    %14 = vector.shape_cast %13 : vector<1x1x8x256xf32> to vector<8x256xf32>
    %15 = arith.mulf %12, %14 : vector<8x256xf32>
    %16 = arith.addf %11, %15 : vector<8x256xf32>
    %c16_i32 = arith.constant 16 : i32
    %17 = tpu.dynamic_rotate %8 by %c16_i32 dim 1 : vector<8x256xf32>, i32 -> vector<8x256xf32>
    %c0_14 = arith.constant 0 : index
    %c1 = arith.constant 1 : index
    %c0_15 = arith.constant 0 : index
    %c0_16 = arith.constant 0 : index
    %18 = vector.load %arg4[%c0_14, %c1, %c0_15, %c0_16] : memref<3x9x8x256xf32, #tpu.memory_space<vmem>>, vector<1x1x8x256xf32>
    %19 = vector.shape_cast %18 : vector<1x1x8x256xf32> to vector<8x256xf32>
    %20 = arith.mulf %17, %19 : vector<8x256xf32>
    %21 = arith.addf %16, %20 : vector<8x256xf32>
    %c15_i32 = arith.constant 15 : i32
    %22 = tpu.dynamic_rotate %8 by %c15_i32 dim 1 : vector<8x256xf32>, i32 -> vector<8x256xf32>
    %c0_17 = arith.constant 0 : index
    %c2 = arith.constant 2 : index
    %c0_18 = arith.constant 0 : index
    %c0_19 = arith.constant 0 : index
    %23 = vector.load %arg4[%c0_17, %c2, %c0_18, %c0_19] : memref<3x9x8x256xf32, #tpu.memory_space<vmem>>, vector<1x1x8x256xf32>
    %24 = vector.shape_cast %23 : vector<1x1x8x256xf32> to vector<8x256xf32>
    %25 = arith.mulf %22, %24 : vector<8x256xf32>
    %26 = arith.addf %21, %25 : vector<8x256xf32>
    %c1_i32 = arith.constant 1 : i32
    %27 = tpu.dynamic_rotate %8 by %c1_i32 dim 1 : vector<8x256xf32>, i32 -> vector<8x256xf32>
    %c0_20 = arith.constant 0 : index
    %c3 = arith.constant 3 : index
    %c0_21 = arith.constant 0 : index
    %c0_22 = arith.constant 0 : index
    %28 = vector.load %arg4[%c0_20, %c3, %c0_21, %c0_22] : memref<3x9x8x256xf32, #tpu.memory_space<vmem>>, vector<1x1x8x256xf32>
    %29 = vector.shape_cast %28 : vector<1x1x8x256xf32> to vector<8x256xf32>
    %30 = arith.mulf %27, %29 : vector<8x256xf32>
    %31 = arith.addf %26, %30 : vector<8x256xf32>
    %c255_i32 = arith.constant 255 : i32
    %32 = tpu.dynamic_rotate %8 by %c255_i32 dim 1 : vector<8x256xf32>, i32 -> vector<8x256xf32>
    %c0_23 = arith.constant 0 : index
    %c5 = arith.constant 5 : index
    %c0_24 = arith.constant 0 : index
    %c0_25 = arith.constant 0 : index
    %33 = vector.load %arg4[%c0_23, %c5, %c0_24, %c0_25] : memref<3x9x8x256xf32, #tpu.memory_space<vmem>>, vector<1x1x8x256xf32>
    %34 = vector.shape_cast %33 : vector<1x1x8x256xf32> to vector<8x256xf32>
    %35 = arith.mulf %32, %34 : vector<8x256xf32>
    %36 = arith.addf %31, %35 : vector<8x256xf32>
    %c241_i32 = arith.constant 241 : i32
    %37 = tpu.dynamic_rotate %8 by %c241_i32 dim 1 : vector<8x256xf32>, i32 -> vector<8x256xf32>
    %c0_26 = arith.constant 0 : index
    %c6 = arith.constant 6 : index
    %c0_27 = arith.constant 0 : index
    %c0_28 = arith.constant 0 : index
    %38 = vector.load %arg4[%c0_26, %c6, %c0_27, %c0_28] : memref<3x9x8x256xf32, #tpu.memory_space<vmem>>, vector<1x1x8x256xf32>
    %39 = vector.shape_cast %38 : vector<1x1x8x256xf32> to vector<8x256xf32>
    %40 = arith.mulf %37, %39 : vector<8x256xf32>
    %41 = arith.addf %36, %40 : vector<8x256xf32>
    %c240_i32 = arith.constant 240 : i32
    %42 = tpu.dynamic_rotate %8 by %c240_i32 dim 1 : vector<8x256xf32>, i32 -> vector<8x256xf32>
    %c0_29 = arith.constant 0 : index
    %c7 = arith.constant 7 : index
    %c0_30 = arith.constant 0 : index
    %c0_31 = arith.constant 0 : index
    %43 = vector.load %arg4[%c0_29, %c7, %c0_30, %c0_31] : memref<3x9x8x256xf32, #tpu.memory_space<vmem>>, vector<1x1x8x256xf32>
    %44 = vector.shape_cast %43 : vector<1x1x8x256xf32> to vector<8x256xf32>
    %45 = arith.mulf %42, %44 : vector<8x256xf32>
    %46 = arith.addf %41, %45 : vector<8x256xf32>
    %c239_i32 = arith.constant 239 : i32
    %47 = tpu.dynamic_rotate %8 by %c239_i32 dim 1 : vector<8x256xf32>, i32 -> vector<8x256xf32>
    %c0_32 = arith.constant 0 : index
    %c8 = arith.constant 8 : index
    %c0_33 = arith.constant 0 : index
    %c0_34 = arith.constant 0 : index
    %48 = vector.load %arg4[%c0_32, %c8, %c0_33, %c0_34] : memref<3x9x8x256xf32, #tpu.memory_space<vmem>>, vector<1x1x8x256xf32>
    %49 = vector.shape_cast %48 : vector<1x1x8x256xf32> to vector<8x256xf32>
    %50 = arith.mulf %47, %49 : vector<8x256xf32>
    %51 = arith.addf %46, %50 : vector<8x256xf32>
    %cst_35 = arith.constant 0.000000e+00 : f32
    %52 = vector.broadcast %cst_35 : f32 to vector<8x256xf32>
    %53 = arith.cmpf ogt, %51, %52 : vector<8x256xf32>
    %cst_36 = arith.constant 0.000000e+00 : f32
    %54 = vector.broadcast %cst_36 : f32 to vector<8x256xf32>
    %55 = arith.minimumf %51, %54 : vector<8x256xf32>
    %56 = math.exp %55 : vector<8x256xf32>
    %cst_37 = arith.constant 1.000000e+00 : f32
    %57 = vector.broadcast %cst_37 : f32 to vector<8x256xf32>
    %58 = arith.subf %56, %57 : vector<8x256xf32>
    %59 = arith.select %53, %51, %58 : vector<8x256xi1>, vector<8x256xf32>
    %c0_38 = arith.constant 0 : index
    %c0_39 = arith.constant 0 : index
    %c0_40 = arith.constant 0 : index
    %60 = vector.load %arg5[%c0_38, %c0_39, %c0_40] : memref<3x8x8xf32, #tpu.memory_space<vmem>>, vector<1x8x8xf32>
    %61 = vector.shape_cast %60 : vector<1x8x8xf32> to vector<8x8xf32>
    %cst_41 = arith.constant dense<0.000000e+00> : vector<8x256xf32>
    %62 = tpu.matmul %61, %59, %cst_41 {dimension_numbers = #tpu.dot_dimension_numbers<[1], [0], [0], [1], [0, 0, 1, 1], [], []>} : vector<8x8xf32>, vector<8x256xf32>, vector<8x256xf32> -> vector<8x256xf32>
    %cst_42 = arith.constant 0.000000e+00 : f32
    %63 = vector.broadcast %cst_42 : f32 to vector<8x256xf32>
    %64 = arith.cmpf ogt, %62, %63 : vector<8x256xf32>
    %cst_43 = arith.constant 0.000000e+00 : f32
    %65 = vector.broadcast %cst_43 : f32 to vector<8x256xf32>
    %66 = arith.minimumf %62, %65 : vector<8x256xf32>
    %67 = math.exp %66 : vector<8x256xf32>
    %cst_44 = arith.constant 1.000000e+00 : f32
    %68 = vector.broadcast %cst_44 : f32 to vector<8x256xf32>
    %69 = arith.subf %67, %68 : vector<8x256xf32>
    %70 = arith.select %64, %62, %69 : vector<8x256xi1>, vector<8x256xf32>
    %c1_45 = arith.constant 1 : index
    %c4_46 = arith.constant 4 : index
    %c0_47 = arith.constant 0 : index
    %c0_48 = arith.constant 0 : index
    %71 = vector.load %arg4[%c1_45, %c4_46, %c0_47, %c0_48] : memref<3x9x8x256xf32, #tpu.memory_space<vmem>>, vector<1x1x8x256xf32>
    %72 = vector.shape_cast %71 : vector<1x1x8x256xf32> to vector<8x256xf32>
    %73 = arith.mulf %70, %72 : vector<8x256xf32>
    %c17_i32_49 = arith.constant 17 : i32
    %74 = tpu.dynamic_rotate %70 by %c17_i32_49 dim 1 : vector<8x256xf32>, i32 -> vector<8x256xf32>
    %c1_50 = arith.constant 1 : index
    %c0_51 = arith.constant 0 : index
    %c0_52 = arith.constant 0 : index
    %c0_53 = arith.constant 0 : index
    %75 = vector.load %arg4[%c1_50, %c0_51, %c0_52, %c0_53] : memref<3x9x8x256xf32, #tpu.memory_space<vmem>>, vector<1x1x8x256xf32>
    %76 = vector.shape_cast %75 : vector<1x1x8x256xf32> to vector<8x256xf32>
    %77 = arith.mulf %74, %76 : vector<8x256xf32>
    %78 = arith.addf %73, %77 : vector<8x256xf32>
    %c16_i32_54 = arith.constant 16 : i32
    %79 = tpu.dynamic_rotate %70 by %c16_i32_54 dim 1 : vector<8x256xf32>, i32 -> vector<8x256xf32>
    %c1_55 = arith.constant 1 : index
    %c1_56 = arith.constant 1 : index
    %c0_57 = arith.constant 0 : index
    %c0_58 = arith.constant 0 : index
    %80 = vector.load %arg4[%c1_55, %c1_56, %c0_57, %c0_58] : memref<3x9x8x256xf32, #tpu.memory_space<vmem>>, vector<1x1x8x256xf32>
    %81 = vector.shape_cast %80 : vector<1x1x8x256xf32> to vector<8x256xf32>
    %82 = arith.mulf %79, %81 : vector<8x256xf32>
    %83 = arith.addf %78, %82 : vector<8x256xf32>
    %c15_i32_59 = arith.constant 15 : i32
    %84 = tpu.dynamic_rotate %70 by %c15_i32_59 dim 1 : vector<8x256xf32>, i32 -> vector<8x256xf32>
    %c1_60 = arith.constant 1 : index
    %c2_61 = arith.constant 2 : index
    %c0_62 = arith.constant 0 : index
    %c0_63 = arith.constant 0 : index
    %85 = vector.load %arg4[%c1_60, %c2_61, %c0_62, %c0_63] : memref<3x9x8x256xf32, #tpu.memory_space<vmem>>, vector<1x1x8x256xf32>
    %86 = vector.shape_cast %85 : vector<1x1x8x256xf32> to vector<8x256xf32>
    %87 = arith.mulf %84, %86 : vector<8x256xf32>
    %88 = arith.addf %83, %87 : vector<8x256xf32>
    %c1_i32_64 = arith.constant 1 : i32
    %89 = tpu.dynamic_rotate %70 by %c1_i32_64 dim 1 : vector<8x256xf32>, i32 -> vector<8x256xf32>
    %c1_65 = arith.constant 1 : index
    %c3_66 = arith.constant 3 : index
    %c0_67 = arith.constant 0 : index
    %c0_68 = arith.constant 0 : index
    %90 = vector.load %arg4[%c1_65, %c3_66, %c0_67, %c0_68] : memref<3x9x8x256xf32, #tpu.memory_space<vmem>>, vector<1x1x8x256xf32>
    %91 = vector.shape_cast %90 : vector<1x1x8x256xf32> to vector<8x256xf32>
    %92 = arith.mulf %89, %91 : vector<8x256xf32>
    %93 = arith.addf %88, %92 : vector<8x256xf32>
    %c255_i32_69 = arith.constant 255 : i32
    %94 = tpu.dynamic_rotate %70 by %c255_i32_69 dim 1 : vector<8x256xf32>, i32 -> vector<8x256xf32>
    %c1_70 = arith.constant 1 : index
    %c5_71 = arith.constant 5 : index
    %c0_72 = arith.constant 0 : index
    %c0_73 = arith.constant 0 : index
    %95 = vector.load %arg4[%c1_70, %c5_71, %c0_72, %c0_73] : memref<3x9x8x256xf32, #tpu.memory_space<vmem>>, vector<1x1x8x256xf32>
    %96 = vector.shape_cast %95 : vector<1x1x8x256xf32> to vector<8x256xf32>
    %97 = arith.mulf %94, %96 : vector<8x256xf32>
    %98 = arith.addf %93, %97 : vector<8x256xf32>
    %c241_i32_74 = arith.constant 241 : i32
    %99 = tpu.dynamic_rotate %70 by %c241_i32_74 dim 1 : vector<8x256xf32>, i32 -> vector<8x256xf32>
    %c1_75 = arith.constant 1 : index
    %c6_76 = arith.constant 6 : index
    %c0_77 = arith.constant 0 : index
    %c0_78 = arith.constant 0 : index
    %100 = vector.load %arg4[%c1_75, %c6_76, %c0_77, %c0_78] : memref<3x9x8x256xf32, #tpu.memory_space<vmem>>, vector<1x1x8x256xf32>
    %101 = vector.shape_cast %100 : vector<1x1x8x256xf32> to vector<8x256xf32>
    %102 = arith.mulf %99, %101 : vector<8x256xf32>
    %103 = arith.addf %98, %102 : vector<8x256xf32>
    %c240_i32_79 = arith.constant 240 : i32
    %104 = tpu.dynamic_rotate %70 by %c240_i32_79 dim 1 : vector<8x256xf32>, i32 -> vector<8x256xf32>
    %c1_80 = arith.constant 1 : index
    %c7_81 = arith.constant 7 : index
    %c0_82 = arith.constant 0 : index
    %c0_83 = arith.constant 0 : index
    %105 = vector.load %arg4[%c1_80, %c7_81, %c0_82, %c0_83] : memref<3x9x8x256xf32, #tpu.memory_space<vmem>>, vector<1x1x8x256xf32>
    %106 = vector.shape_cast %105 : vector<1x1x8x256xf32> to vector<8x256xf32>
    %107 = arith.mulf %104, %106 : vector<8x256xf32>
    %108 = arith.addf %103, %107 : vector<8x256xf32>
    %c239_i32_84 = arith.constant 239 : i32
    %109 = tpu.dynamic_rotate %70 by %c239_i32_84 dim 1 : vector<8x256xf32>, i32 -> vector<8x256xf32>
    %c1_85 = arith.constant 1 : index
    %c8_86 = arith.constant 8 : index
    %c0_87 = arith.constant 0 : index
    %c0_88 = arith.constant 0 : index
    %110 = vector.load %arg4[%c1_85, %c8_86, %c0_87, %c0_88] : memref<3x9x8x256xf32, #tpu.memory_space<vmem>>, vector<1x1x8x256xf32>
    %111 = vector.shape_cast %110 : vector<1x1x8x256xf32> to vector<8x256xf32>
    %112 = arith.mulf %109, %111 : vector<8x256xf32>
    %113 = arith.addf %108, %112 : vector<8x256xf32>
    %cst_89 = arith.constant 0.000000e+00 : f32
    %114 = vector.broadcast %cst_89 : f32 to vector<8x256xf32>
    %115 = arith.cmpf ogt, %113, %114 : vector<8x256xf32>
    %cst_90 = arith.constant 0.000000e+00 : f32
    %116 = vector.broadcast %cst_90 : f32 to vector<8x256xf32>
    %117 = arith.minimumf %113, %116 : vector<8x256xf32>
    %118 = math.exp %117 : vector<8x256xf32>
    %cst_91 = arith.constant 1.000000e+00 : f32
    %119 = vector.broadcast %cst_91 : f32 to vector<8x256xf32>
    %120 = arith.subf %118, %119 : vector<8x256xf32>
    %121 = arith.select %115, %113, %120 : vector<8x256xi1>, vector<8x256xf32>
    %c1_92 = arith.constant 1 : index
    %c0_93 = arith.constant 0 : index
    %c0_94 = arith.constant 0 : index
    %122 = vector.load %arg5[%c1_92, %c0_93, %c0_94] : memref<3x8x8xf32, #tpu.memory_space<vmem>>, vector<1x8x8xf32>
    %123 = vector.shape_cast %122 : vector<1x8x8xf32> to vector<8x8xf32>
    %cst_95 = arith.constant dense<0.000000e+00> : vector<8x256xf32>
    %124 = tpu.matmul %123, %121, %cst_95 {dimension_numbers = #tpu.dot_dimension_numbers<[1], [0], [0], [1], [0, 0, 1, 1], [], []>} : vector<8x8xf32>, vector<8x256xf32>, vector<8x256xf32> -> vector<8x256xf32>
    %cst_96 = arith.constant 0.000000e+00 : f32
    %125 = vector.broadcast %cst_96 : f32 to vector<8x256xf32>
    %126 = arith.cmpf ogt, %124, %125 : vector<8x256xf32>
    %cst_97 = arith.constant 0.000000e+00 : f32
    %127 = vector.broadcast %cst_97 : f32 to vector<8x256xf32>
    %128 = arith.minimumf %124, %127 : vector<8x256xf32>
    %129 = math.exp %128 : vector<8x256xf32>
    %cst_98 = arith.constant 1.000000e+00 : f32
    %130 = vector.broadcast %cst_98 : f32 to vector<8x256xf32>
    %131 = arith.subf %129, %130 : vector<8x256xf32>
    %132 = arith.select %126, %124, %131 : vector<8x256xi1>, vector<8x256xf32>
    %c2_99 = arith.constant 2 : index
    %c4_100 = arith.constant 4 : index
    %c0_101 = arith.constant 0 : index
    %c0_102 = arith.constant 0 : index
    %133 = vector.load %arg4[%c2_99, %c4_100, %c0_101, %c0_102] : memref<3x9x8x256xf32, #tpu.memory_space<vmem>>, vector<1x1x8x256xf32>
    %134 = vector.shape_cast %133 : vector<1x1x8x256xf32> to vector<8x256xf32>
    %135 = arith.mulf %132, %134 : vector<8x256xf32>
    %c17_i32_103 = arith.constant 17 : i32
    %136 = tpu.dynamic_rotate %132 by %c17_i32_103 dim 1 : vector<8x256xf32>, i32 -> vector<8x256xf32>
    %c2_104 = arith.constant 2 : index
    %c0_105 = arith.constant 0 : index
    %c0_106 = arith.constant 0 : index
    %c0_107 = arith.constant 0 : index
    %137 = vector.load %arg4[%c2_104, %c0_105, %c0_106, %c0_107] : memref<3x9x8x256xf32, #tpu.memory_space<vmem>>, vector<1x1x8x256xf32>
    %138 = vector.shape_cast %137 : vector<1x1x8x256xf32> to vector<8x256xf32>
    %139 = arith.mulf %136, %138 : vector<8x256xf32>
    %140 = arith.addf %135, %139 : vector<8x256xf32>
    %c16_i32_108 = arith.constant 16 : i32
    %141 = tpu.dynamic_rotate %132 by %c16_i32_108 dim 1 : vector<8x256xf32>, i32 -> vector<8x256xf32>
    %c2_109 = arith.constant 2 : index
    %c1_110 = arith.constant 1 : index
    %c0_111 = arith.constant 0 : index
    %c0_112 = arith.constant 0 : index
    %142 = vector.load %arg4[%c2_109, %c1_110, %c0_111, %c0_112] : memref<3x9x8x256xf32, #tpu.memory_space<vmem>>, vector<1x1x8x256xf32>
    %143 = vector.shape_cast %142 : vector<1x1x8x256xf32> to vector<8x256xf32>
    %144 = arith.mulf %141, %143 : vector<8x256xf32>
    %145 = arith.addf %140, %144 : vector<8x256xf32>
    %c15_i32_113 = arith.constant 15 : i32
    %146 = tpu.dynamic_rotate %132 by %c15_i32_113 dim 1 : vector<8x256xf32>, i32 -> vector<8x256xf32>
    %c2_114 = arith.constant 2 : index
    %c2_115 = arith.constant 2 : index
    %c0_116 = arith.constant 0 : index
    %c0_117 = arith.constant 0 : index
    %147 = vector.load %arg4[%c2_114, %c2_115, %c0_116, %c0_117] : memref<3x9x8x256xf32, #tpu.memory_space<vmem>>, vector<1x1x8x256xf32>
    %148 = vector.shape_cast %147 : vector<1x1x8x256xf32> to vector<8x256xf32>
    %149 = arith.mulf %146, %148 : vector<8x256xf32>
    %150 = arith.addf %145, %149 : vector<8x256xf32>
    %c1_i32_118 = arith.constant 1 : i32
    %151 = tpu.dynamic_rotate %132 by %c1_i32_118 dim 1 : vector<8x256xf32>, i32 -> vector<8x256xf32>
    %c2_119 = arith.constant 2 : index
    %c3_120 = arith.constant 3 : index
    %c0_121 = arith.constant 0 : index
    %c0_122 = arith.constant 0 : index
    %152 = vector.load %arg4[%c2_119, %c3_120, %c0_121, %c0_122] : memref<3x9x8x256xf32, #tpu.memory_space<vmem>>, vector<1x1x8x256xf32>
    %153 = vector.shape_cast %152 : vector<1x1x8x256xf32> to vector<8x256xf32>
    %154 = arith.mulf %151, %153 : vector<8x256xf32>
    %155 = arith.addf %150, %154 : vector<8x256xf32>
    %c255_i32_123 = arith.constant 255 : i32
    %156 = tpu.dynamic_rotate %132 by %c255_i32_123 dim 1 : vector<8x256xf32>, i32 -> vector<8x256xf32>
    %c2_124 = arith.constant 2 : index
    %c5_125 = arith.constant 5 : index
    %c0_126 = arith.constant 0 : index
    %c0_127 = arith.constant 0 : index
    %157 = vector.load %arg4[%c2_124, %c5_125, %c0_126, %c0_127] : memref<3x9x8x256xf32, #tpu.memory_space<vmem>>, vector<1x1x8x256xf32>
    %158 = vector.shape_cast %157 : vector<1x1x8x256xf32> to vector<8x256xf32>
    %159 = arith.mulf %156, %158 : vector<8x256xf32>
    %160 = arith.addf %155, %159 : vector<8x256xf32>
    %c241_i32_128 = arith.constant 241 : i32
    %161 = tpu.dynamic_rotate %132 by %c241_i32_128 dim 1 : vector<8x256xf32>, i32 -> vector<8x256xf32>
    %c2_129 = arith.constant 2 : index
    %c6_130 = arith.constant 6 : index
    %c0_131 = arith.constant 0 : index
    %c0_132 = arith.constant 0 : index
    %162 = vector.load %arg4[%c2_129, %c6_130, %c0_131, %c0_132] : memref<3x9x8x256xf32, #tpu.memory_space<vmem>>, vector<1x1x8x256xf32>
    %163 = vector.shape_cast %162 : vector<1x1x8x256xf32> to vector<8x256xf32>
    %164 = arith.mulf %161, %163 : vector<8x256xf32>
    %165 = arith.addf %160, %164 : vector<8x256xf32>
    %c240_i32_133 = arith.constant 240 : i32
    %166 = tpu.dynamic_rotate %132 by %c240_i32_133 dim 1 : vector<8x256xf32>, i32 -> vector<8x256xf32>
    %c2_134 = arith.constant 2 : index
    %c7_135 = arith.constant 7 : index
    %c0_136 = arith.constant 0 : index
    %c0_137 = arith.constant 0 : index
    %167 = vector.load %arg4[%c2_134, %c7_135, %c0_136, %c0_137] : memref<3x9x8x256xf32, #tpu.memory_space<vmem>>, vector<1x1x8x256xf32>
    %168 = vector.shape_cast %167 : vector<1x1x8x256xf32> to vector<8x256xf32>
    %169 = arith.mulf %166, %168 : vector<8x256xf32>
    %170 = arith.addf %165, %169 : vector<8x256xf32>
    %c239_i32_138 = arith.constant 239 : i32
    %171 = tpu.dynamic_rotate %132 by %c239_i32_138 dim 1 : vector<8x256xf32>, i32 -> vector<8x256xf32>
    %c2_139 = arith.constant 2 : index
    %c8_140 = arith.constant 8 : index
    %c0_141 = arith.constant 0 : index
    %c0_142 = arith.constant 0 : index
    %172 = vector.load %arg4[%c2_139, %c8_140, %c0_141, %c0_142] : memref<3x9x8x256xf32, #tpu.memory_space<vmem>>, vector<1x1x8x256xf32>
    %173 = vector.shape_cast %172 : vector<1x1x8x256xf32> to vector<8x256xf32>
    %174 = arith.mulf %171, %173 : vector<8x256xf32>
    %175 = arith.addf %170, %174 : vector<8x256xf32>
    %cst_143 = arith.constant 0.000000e+00 : f32
    %176 = vector.broadcast %cst_143 : f32 to vector<8x256xf32>
    %177 = arith.cmpf ogt, %175, %176 : vector<8x256xf32>
    %cst_144 = arith.constant 0.000000e+00 : f32
    %178 = vector.broadcast %cst_144 : f32 to vector<8x256xf32>
    %179 = arith.minimumf %175, %178 : vector<8x256xf32>
    %180 = math.exp %179 : vector<8x256xf32>
    %cst_145 = arith.constant 1.000000e+00 : f32
    %181 = vector.broadcast %cst_145 : f32 to vector<8x256xf32>
    %182 = arith.subf %180, %181 : vector<8x256xf32>
    %183 = arith.select %177, %175, %182 : vector<8x256xi1>, vector<8x256xf32>
    %c2_146 = arith.constant 2 : index
    %c0_147 = arith.constant 0 : index
    %c0_148 = arith.constant 0 : index
    %184 = vector.load %arg5[%c2_146, %c0_147, %c0_148] : memref<3x8x8xf32, #tpu.memory_space<vmem>>, vector<1x8x8xf32>
    %185 = vector.shape_cast %184 : vector<1x8x8xf32> to vector<8x8xf32>
    %cst_149 = arith.constant dense<0.000000e+00> : vector<8x256xf32>
    %186 = tpu.matmul %185, %183, %cst_149 {dimension_numbers = #tpu.dot_dimension_numbers<[1], [0], [0], [1], [0, 0, 1, 1], [], []>} : vector<8x8xf32>, vector<8x256xf32>, vector<8x256xf32> -> vector<8x256xf32>
    %cst_150 = arith.constant 0.000000e+00 : f32
    %187 = vector.broadcast %cst_150 : f32 to vector<8x256xf32>
    %188 = arith.cmpf ogt, %186, %187 : vector<8x256xf32>
    %cst_151 = arith.constant 0.000000e+00 : f32
    %189 = vector.broadcast %cst_151 : f32 to vector<8x256xf32>
    %190 = arith.minimumf %186, %189 : vector<8x256xf32>
    %191 = math.exp %190 : vector<8x256xf32>
    %cst_152 = arith.constant 1.000000e+00 : f32
    %192 = vector.broadcast %cst_152 : f32 to vector<8x256xf32>
    %193 = arith.subf %191, %192 : vector<8x256xf32>
    %194 = arith.select %188, %186, %193 : vector<8x256xi1>, vector<8x256xf32>
    %195 = arith.addf %8, %194 : vector<8x256xf32>
    %c17_i32_153 = arith.constant 17 : i32
    %196 = tpu.dynamic_rotate %195 by %c17_i32_153 dim 1 : vector<8x256xf32>, i32 -> vector<8x256xf32>
    %c0_154 = arith.constant 0 : index
    %c0_155 = arith.constant 0 : index
    %c0_156 = arith.constant 0 : index
    %197 = vector.load %arg7[%c0_154, %c0_155, %c0_156] : memref<9x1x256xf32, #tpu.memory_space<vmem>>, vector<1x1x256xf32>
    %198 = vector.shape_cast %197 : vector<1x1x256xf32> to vector<1x256xf32>
    %199 = vector.broadcast %198 : vector<1x256xf32> to vector<8x256xf32>
    %200 = arith.mulf %196, %199 : vector<8x256xf32>
    %c0_157 = arith.constant 0 : index
    %c0_158 = arith.constant 0 : index
    %201 = vector.load %arg9[%c0_157, %c0_158] : memref<73x256xf32, #tpu.memory_space<vmem>>, vector<8x256xf32>
    tpu.vector_store %arg9[%c0_157, %c0_158], %200 {strides = array<i32>} : memref<73x256xf32, #tpu.memory_space<vmem>>, vector<8x256xf32>,
    %c16_i32_159 = arith.constant 16 : i32
    %202 = tpu.dynamic_rotate %195 by %c16_i32_159 dim 1 : vector<8x256xf32>, i32 -> vector<8x256xf32>
    %c1_160 = arith.constant 1 : index
    %c0_161 = arith.constant 0 : index
    %c0_162 = arith.constant 0 : index
    %203 = vector.load %arg7[%c1_160, %c0_161, %c0_162] : memref<9x1x256xf32, #tpu.memory_space<vmem>>, vector<1x1x256xf32>
    %204 = vector.shape_cast %203 : vector<1x1x256xf32> to vector<1x256xf32>
    %205 = vector.broadcast %204 : vector<1x256xf32> to vector<8x256xf32>
    %206 = arith.mulf %202, %205 : vector<8x256xf32>
    %c8_163 = arith.constant 8 : index
    %c0_164 = arith.constant 0 : index
    %207 = vector.load %arg9[%c8_163, %c0_164] : memref<73x256xf32, #tpu.memory_space<vmem>>, vector<8x256xf32>
    tpu.vector_store %arg9[%c8_163, %c0_164], %206 {strides = array<i32>} : memref<73x256xf32, #tpu.memory_space<vmem>>, vector<8x256xf32>,
    %c15_i32_165 = arith.constant 15 : i32
    %208 = tpu.dynamic_rotate %195 by %c15_i32_165 dim 1 : vector<8x256xf32>, i32 -> vector<8x256xf32>
    %c2_166 = arith.constant 2 : index
    %c0_167 = arith.constant 0 : index
    %c0_168 = arith.constant 0 : index
    %209 = vector.load %arg7[%c2_166, %c0_167, %c0_168] : memref<9x1x256xf32, #tpu.memory_space<vmem>>, vector<1x1x256xf32>
    %210 = vector.shape_cast %209 : vector<1x1x256xf32> to vector<1x256xf32>
    %211 = vector.broadcast %210 : vector<1x256xf32> to vector<8x256xf32>
    %212 = arith.mulf %208, %211 : vector<8x256xf32>
    %c16 = arith.constant 16 : index
    %c0_169 = arith.constant 0 : index
    %213 = vector.load %arg9[%c16, %c0_169] : memref<73x256xf32, #tpu.memory_space<vmem>>, vector<8x256xf32>
    tpu.vector_store %arg9[%c16, %c0_169], %212 {strides = array<i32>} : memref<73x256xf32, #tpu.memory_space<vmem>>, vector<8x256xf32>,
    %c1_i32_170 = arith.constant 1 : i32
    %214 = tpu.dynamic_rotate %195 by %c1_i32_170 dim 1 : vector<8x256xf32>, i32 -> vector<8x256xf32>
    %c3_171 = arith.constant 3 : index
    %c0_172 = arith.constant 0 : index
    %c0_173 = arith.constant 0 : index
    %215 = vector.load %arg7[%c3_171, %c0_172, %c0_173] : memref<9x1x256xf32, #tpu.memory_space<vmem>>, vector<1x1x256xf32>
    %216 = vector.shape_cast %215 : vector<1x1x256xf32> to vector<1x256xf32>
    %217 = vector.broadcast %216 : vector<1x256xf32> to vector<8x256xf32>
    %218 = arith.mulf %214, %217 : vector<8x256xf32>
    %c24 = arith.constant 24 : index
    %c0_174 = arith.constant 0 : index
    %219 = vector.load %arg9[%c24, %c0_174] : memref<73x256xf32, #tpu.memory_space<vmem>>, vector<8x256xf32>
    tpu.vector_store %arg9[%c24, %c0_174], %218 {strides = array<i32>} : memref<73x256xf32, #tpu.memory_space<vmem>>, vector<8x256xf32>,
    %c32 = arith.constant 32 : index
    %c0_175 = arith.constant 0 : index
    %220 = vector.load %arg9[%c32, %c0_175] : memref<73x256xf32, #tpu.memory_space<vmem>>, vector<8x256xf32>
    tpu.vector_store %arg9[%c32, %c0_175], %195 {strides = array<i32>} : memref<73x256xf32, #tpu.memory_space<vmem>>, vector<8x256xf32>,
    %c255_i32_176 = arith.constant 255 : i32
    %221 = tpu.dynamic_rotate %195 by %c255_i32_176 dim 1 : vector<8x256xf32>, i32 -> vector<8x256xf32>
    %c5_177 = arith.constant 5 : index
    %c0_178 = arith.constant 0 : index
    %c0_179 = arith.constant 0 : index
    %222 = vector.load %arg7[%c5_177, %c0_178, %c0_179] : memref<9x1x256xf32, #tpu.memory_space<vmem>>, vector<1x1x256xf32>
    %223 = vector.shape_cast %222 : vector<1x1x256xf32> to vector<1x256xf32>
    %224 = vector.broadcast %223 : vector<1x256xf32> to vector<8x256xf32>
    %225 = arith.mulf %221, %224 : vector<8x256xf32>
    %c40 = arith.constant 40 : index
    %c0_180 = arith.constant 0 : index
    %226 = vector.load %arg9[%c40, %c0_180] : memref<73x256xf32, #tpu.memory_space<vmem>>, vector<8x256xf32>
    tpu.vector_store %arg9[%c40, %c0_180], %225 {strides = array<i32>} : memref<73x256xf32, #tpu.memory_space<vmem>>, vector<8x256xf32>,
    %c241_i32_181 = arith.constant 241 : i32
    %227 = tpu.dynamic_rotate %195 by %c241_i32_181 dim 1 : vector<8x256xf32>, i32 -> vector<8x256xf32>
    %c6_182 = arith.constant 6 : index
    %c0_183 = arith.constant 0 : index
    %c0_184 = arith.constant 0 : index
    %228 = vector.load %arg7[%c6_182, %c0_183, %c0_184] : memref<9x1x256xf32, #tpu.memory_space<vmem>>, vector<1x1x256xf32>
    %229 = vector.shape_cast %228 : vector<1x1x256xf32> to vector<1x256xf32>
    %230 = vector.broadcast %229 : vector<1x256xf32> to vector<8x256xf32>
    %231 = arith.mulf %227, %230 : vector<8x256xf32>
    %c48 = arith.constant 48 : index
    %c0_185 = arith.constant 0 : index
    %232 = vector.load %arg9[%c48, %c0_185] : memref<73x256xf32, #tpu.memory_space<vmem>>, vector<8x256xf32>
    tpu.vector_store %arg9[%c48, %c0_185], %231 {strides = array<i32>} : memref<73x256xf32, #tpu.memory_space<vmem>>, vector<8x256xf32>,
    %c240_i32_186 = arith.constant 240 : i32
    %233 = tpu.dynamic_rotate %195 by %c240_i32_186 dim 1 : vector<8x256xf32>, i32 -> vector<8x256xf32>
    %c7_187 = arith.constant 7 : index
    %c0_188 = arith.constant 0 : index
    %c0_189 = arith.constant 0 : index
    %234 = vector.load %arg7[%c7_187, %c0_188, %c0_189] : memref<9x1x256xf32, #tpu.memory_space<vmem>>, vector<1x1x256xf32>
    %235 = vector.shape_cast %234 : vector<1x1x256xf32> to vector<1x256xf32>
    %236 = vector.broadcast %235 : vector<1x256xf32> to vector<8x256xf32>
    %237 = arith.mulf %233, %236 : vector<8x256xf32>
    %c56 = arith.constant 56 : index
    %c0_190 = arith.constant 0 : index
    %238 = vector.load %arg9[%c56, %c0_190] : memref<73x256xf32, #tpu.memory_space<vmem>>, vector<8x256xf32>
    tpu.vector_store %arg9[%c56, %c0_190], %237 {strides = array<i32>} : memref<73x256xf32, #tpu.memory_space<vmem>>, vector<8x256xf32>,
    %c239_i32_191 = arith.constant 239 : i32
    %239 = tpu.dynamic_rotate %195 by %c239_i32_191 dim 1 : vector<8x256xf32>, i32 -> vector<8x256xf32>
    %c8_192 = arith.constant 8 : index
    %c0_193 = arith.constant 0 : index
    %c0_194 = arith.constant 0 : index
    %240 = vector.load %arg7[%c8_192, %c0_193, %c0_194] : memref<9x1x256xf32, #tpu.memory_space<vmem>>, vector<1x1x256xf32>
    %241 = vector.shape_cast %240 : vector<1x1x256xf32> to vector<1x256xf32>
    %242 = vector.broadcast %241 : vector<1x256xf32> to vector<8x256xf32>
    %243 = arith.mulf %239, %242 : vector<8x256xf32>
    %c64 = arith.constant 64 : index
    %c0_195 = arith.constant 0 : index
    %244 = vector.load %arg9[%c64, %c0_195] : memref<73x256xf32, #tpu.memory_space<vmem>>, vector<8x256xf32>
    tpu.vector_store %arg9[%c64, %c0_195], %243 {strides = array<i32>} : memref<73x256xf32, #tpu.memory_space<vmem>>, vector<8x256xf32>,
    %cst_196 = arith.constant 1.000000e+00 : f32
    %245 = vector.broadcast %cst_196 : f32 to vector<1x256xf32>
    %c72 = arith.constant 72 : index
    %c0_197 = arith.constant 0 : index
    %246 = vector.load %arg9[%c72, %c0_197] : memref<73x256xf32, #tpu.memory_space<vmem>>, vector<1x256xf32>
    tpu.vector_store %arg9[%c72, %c0_197], %245 {strides = array<i32>} : memref<73x256xf32, #tpu.memory_space<vmem>>, vector<1x256xf32>,
    %c0_198 = arith.constant 0 : index
    %c0_199 = arith.constant 0 : index
    %247 = vector.load %arg6[%c0_198, %c0_199] : memref<8x73xf32, #tpu.memory_space<vmem>>, vector<8x73xf32>
    %c0_200 = arith.constant 0 : index
    %c0_201 = arith.constant 0 : index
    %248 = vector.load %arg9[%c0_200, %c0_201] : memref<73x256xf32, #tpu.memory_space<vmem>>, vector<73x256xf32>
    %cst_202 = arith.constant dense<0.000000e+00> : vector<8x256xf32>
    %249 = tpu.matmul %247, %248, %cst_202 {dimension_numbers = #tpu.dot_dimension_numbers<[1], [0], [0], [1], [0, 0, 1, 1], [], []>} : vector<8x73xf32>, vector<73x256xf32>, vector<8x256xf32> -> vector<8x256xf32>
    %cst_203 = arith.constant 0.000000e+00 : f32
    %250 = vector.broadcast %cst_203 : f32 to vector<8x256xf32>
    %251 = arith.maximumf %249, %250 : vector<8x256xf32>
    %c0_204 = arith.constant 0 : index
    %c0_205 = arith.constant 0 : index
    %c0_206 = arith.constant 0 : index
    %252 = vector.load %arg8[%c0_204, %c0_205, %c0_206] : memref<1x8x256xf32, #tpu.memory_space<vmem>>, vector<1x8x256xf32>
    %253 = vector.shape_cast %252 : vector<1x8x256xf32> to vector<8x256xf32>
    %254 = vector.shape_cast %251 : vector<8x256xf32> to vector<1x8x256xf32>
    tpu.vector_store %arg8[%c0_204, %c0_205, %c0_206], %254 {strides = array<i32>} : memref<1x8x256xf32, #tpu.memory_space<vmem>>, vector<1x8x256xf32>,
    return
  }
  func.func @transform_0(%arg0: i32) -> (i32, i32, i32) {
    %c0_i32 = arith.constant 0 : i32
    %c0_i32_0 = arith.constant 0 : i32
    %c0_i32_1 = arith.constant 0 : i32
    return %arg0, %c0_i32, %c0_i32_0 : i32, i32, i32
  }
  func.func @transform_1(%arg0: i32) -> (i32, i32) {
    %c0_i32 = arith.constant 0 : i32
    %c0_i32_0 = arith.constant 0 : i32
    %c0_i32_1 = arith.constant 0 : i32
    return %c0_i32, %c0_i32_0 : i32, i32
  }
  func.func @transform_2(%arg0: i32) -> (i32, i32) {
    %c0_i32 = arith.constant 0 : i32
    %c0_i32_0 = arith.constant 0 : i32
    %c0_i32_1 = arith.constant 0 : i32
    return %c0_i32, %c0_i32_0 : i32, i32
  }
  func.func @transform_3(%arg0: i32) -> (i32, i32, i32, i32) {
    %c0_i32 = arith.constant 0 : i32
    %c0_i32_0 = arith.constant 0 : i32
    %c0_i32_1 = arith.constant 0 : i32
    %c0_i32_2 = arith.constant 0 : i32
    %c0_i32_3 = arith.constant 0 : i32
    return %c0_i32, %c0_i32_0, %c0_i32_1, %c0_i32_2 : i32, i32, i32, i32
  }
  func.func @transform_4(%arg0: i32) -> (i32, i32, i32) {
    %c0_i32 = arith.constant 0 : i32
    %c0_i32_0 = arith.constant 0 : i32
    %c0_i32_1 = arith.constant 0 : i32
    %c0_i32_2 = arith.constant 0 : i32
    return %c0_i32, %c0_i32_0, %c0_i32_1 : i32, i32, i32
  }
  func.func @transform_5(%arg0: i32) -> (i32, i32) {
    %c0_i32 = arith.constant 0 : i32
    %c0_i32_0 = arith.constant 0 : i32
    %c0_i32_1 = arith.constant 0 : i32
    return %c0_i32, %c0_i32_0 : i32, i32
  }
  func.func @transform_6(%arg0: i32) -> (i32, i32, i32) {
    %c0_i32 = arith.constant 0 : i32
    %c0_i32_0 = arith.constant 0 : i32
    %c0_i32_1 = arith.constant 0 : i32
    %c0_i32_2 = arith.constant 0 : i32
    return %c0_i32, %c0_i32_0, %c0_i32_1 : i32, i32, i32
  }
  func.func @transform_7(%arg0: i32) -> (i32, i32, i32) {
    %c0_i32 = arith.constant 0 : i32
    %c0_i32_0 = arith.constant 0 : i32
    %c0_i32_1 = arith.constant 0 : i32
    return %arg0, %c0_i32, %c0_i32_0 : i32, i32, i32
  }
}

</mosaic_0001>

<llo_original>
// kernel: tpu_custom_call.1
$region0: #{tpu_custom_call.1}
  #allocation0 [shape = 'u32[]', space=smem, size = 0x4, offset = 0x4, fixed_abs, tag = 'smem constant byte address 0x4 - core index']
  #allocation1 [shape = 'u32[144,128]{1,0:T(1,128)}', space=vmem, size = 0x12000, scoped, tag = 'internal scratch']
  #allocation2 [shape = 'f32[73,256]{1,0:T(8,128)}', space=vmem, size = 0x14000, scoped, tag = 'scratch operand']
  %s0 = inlined_call_operand.hbm [shape: f32[2,4,256], index: 0, kind: input, shape index: {}]
  %s1 = inlined_call_operand.vmem [shape: f32[8,4], index: 1, kind: input, shape index: {}]
  %s2 = inlined_call_operand.vmem [shape: f32[8,1], index: 2, kind: input, shape index: {}]
  %s3 = inlined_call_operand.hbm [shape: f32[3,9,8,256], index: 3, kind: input, shape index: {}]
  %s4 = inlined_call_operand.vmem [shape: f32[3,8,8], index: 4, kind: input, shape index: {}]
  %s5 = inlined_call_operand.hbm [shape: f32[8,73], index: 5, kind: input, shape index: {}]
  %s6 = inlined_call_operand.vmem [shape: f32[9,1,256], index: 6, kind: input, shape index: {}]
  %s7 = inlined_call_operand.hbm [shape: f32[2,8,256], index: 7, kind: output, shape index: {}]
  %s8 = sld [smem:[#allocation0]]
  $region73: #{tpu_custom_call.1} parent=0
    _
  %s10 = ssub.s32 1, %s8
  %s11 = scalar_select 0, %s10, %s8
  $region1: #{tpu_custom_call.1} parent=0
    #allocation3 [shape = 'u8[8192]{0}', space=vmem, size = 0x2000, scoped, tag = 'input window, operand 0']
    #allocation4 [shape = 's32[2]{0}', space=sflag, size = 0x8, scoped, tag = 'scoped memory for tpu_custom_call.1']
    #allocation5 [shape = 's32[2]{0}', space=sflag, size = 0x8, scoped, tag = 'scoped memory for tpu_custom_call.1']
    #allocation6 [shape = 'u8[221184]{0}', space=vmem, size = 0x36000, scoped, tag = 'input window, operand 3, single buffered']
    #allocation7 [shape = 's32[1]{0}', space=sflag, size = 0x4, scoped, tag = 'scoped memory for tpu_custom_call.1']
    #allocation8 [shape = 'u8[4096]{0}', space=vmem, size = 0x1000, scoped, tag = 'input window, operand 5, single buffered']
    #allocation9 [shape = 'u8[16384]{0}', space=vmem, size = 0x4000, scoped, tag = 'output window, operand 0']
    %12 = vsyncpa [#allocation4], 0
    %s13 = scalar_lea.sflag [#allocation4], 1
    %14 = vsyncpa %s13, 0
    %15 = vsyncpa [#allocation7], 0
    %16 = vsyncpa [#allocation5], 0
    %s17 = scalar_lea.sflag [#allocation5], 1
    %18 = vsyncpa %s17, 0
    loop: start=0, step=1, limit=4
    $region2: #{tpu_custom_call.1} parent=1 // loop_pre_header
      _
    $region3: #{tpu_custom_call.1} parent=1 // loop_header
      %s20 = sphi 0, %s24
      %p21 = scmp.ge.s32.totalorder %s20, 4
      %s30 = sphi 0, %s32
      %s33 = sphi 0, %s30
      %s34 = sphi 0, %s33
      %s50 = sphi 0, %s34
      %s54 = sphi 0, %s54
      %s56 = sphi 0, %s54
      %s57 = sphi 0, %s56
      %s71 = sphi 0, %s57
      %s75 = sphi 0, %s75
      %s77 = sphi 0, %s75
      %s78 = sphi 0, %s77
      %s92 = sphi 0, %s78
      %s96 = sphi 0, %s96
      %s98 = sphi 0, %s96
      %s99 = sphi 0, %s98
      %s113 = sphi 0, %s99
      %s117 = sphi 0, %s117
      %s119 = sphi 0, %s117
      %s120 = sphi 0, %s119
      %s134 = sphi 0, %s120
      %s138 = sphi 0, %s138
      %s140 = sphi 0, %s138
      %s141 = sphi 0, %s140
      %s155 = sphi 0, %s141
      %s159 = sphi 0, %s159
      %s161 = sphi 0, %s159
      %s162 = sphi 0, %s161
      %s176 = sphi 0, %s162
      %s182 = sphi 0, %s184
      %s185 = sphi 0, %s182
      %s186 = sphi 0, %s185
      %s202 = sphi 0, %s186
    $region4: #{tpu_custom_call.1} parent=1 // loop_header_branch
      %23 = sbr.rel (%p21) target = $region8
    $region5: #{tpu_custom_call.1} parent=1 // loop_body
      %s25 = ssub.s32 %s20, 1
      %s26 = ssub.s32 %s20, 2
      %s27 = sadd.s32 %s20, 1
      %s28 = ssub.s32 %s20, %s27
      %p29 = scmp.eq.s32.totalorder %s28, 0
      %s31 = sadd.s32 %s30, 1
      %s32 = scalar_select %p29, %s30, %s31
      %p35 = pneg %p29
      %p36 = scmp.eq.s32.totalorder %s20, 1
      %p37 = por %p35, %p36
      %p38 = scmp.ne.s32.totalorder %s30, %s33
      %p39 = scmp.eq.s32.totalorder %s20, 0
      %p40 = por %p38, %p39
      %p41 = scmp.ne.s32.totalorder %s30, %s33
      %p42 = scmp.eq.s32.totalorder %s25, 1
      %p43 = por %p41, %p42
      %p44 = scmp.ne.s32.totalorder %s33, %s34
      %p45 = scmp.eq.s32.totalorder %s25, 0
      %p46 = por %p44, %p45
      %p47 = scmp.ne.s32.totalorder %s33, %s34
      %p48 = scmp.eq.s32.totalorder %s26, 1
      %p49 = por %p47, %p48
      %p51 = scmp.ne.s32.totalorder %s34, %s50
      %p52 = scmp.eq.s32.totalorder %s26, 0
      %p53 = por %p51, %p52
      %s55 = sadd.s32 %s54, 1
      %p58 = scmp.eq.s32.totalorder %s20, 1
      %p59 = scmp.ne.s32.totalorder %s54, %s56
      %p60 = scmp.eq.s32.totalorder %s20, 0
      %p61 = por %p59, %p60
      %p62 = scmp.ne.s32.totalorder %s54, %s56
      %p63 = scmp.eq.s32.totalorder %s25, 1
      %p64 = por %p62, %p63
      %p65 = scmp.ne.s32.totalorder %s56, %s57
      %p66 = scmp.eq.s32.totalorder %s25, 0
      %p67 = por %p65, %p66
      %p68 = scmp.ne.s32.totalorder %s56, %s57
      %p69 = scmp.eq.s32.totalorder %s26, 1
      %p70 = por %p68, %p69
      %p72 = scmp.ne.s32.totalorder %s57, %s71
      %p73 = scmp.eq.s32.totalorder %s26, 0
      %p74 = por %p72, %p73
      %s76 = sadd.s32 %s75, 1
      %p79 = scmp.eq.s32.totalorder %s20, 1
      %p80 = scmp.ne.s32.totalorder %s75, %s77
      %p81 = scmp.eq.s32.totalorder %s20, 0
      %p82 = por %p80, %p81
      %p83 = scmp.ne.s32.totalorder %s75, %s77
      %p84 = scmp.eq.s32.totalorder %s25, 1
      %p85 = por %p83, %p84
      %p86 = scmp.ne.s32.totalorder %s77, %s78
      %p87 = scmp.eq.s32.totalorder %s25, 0
      %p88 = por %p86, %p87
      %p89 = scmp.ne.s32.totalorder %s77, %s78
      %p90 = scmp.eq.s32.totalorder %s26, 1
      %p91 = por %p89, %p90
      %p93 = scmp.ne.s32.totalorder %s78, %s92
      %p94 = scmp.eq.s32.totalorder %s26, 0
      %p95 = por %p93, %p94
      %s97 = sadd.s32 %s96, 1
      %p100 = scmp.eq.s32.totalorder %s20, 1
      %p101 = scmp.ne.s32.totalorder %s96, %s98
      %p102 = scmp.eq.s32.totalorder %s20, 0
      %p103 = por %p101, %p102
      %p104 = scmp.ne.s32.totalorder %s96, %s98
      %p105 = scmp.eq.s32.totalorder %s25, 1
      %p106 = por %p104, %p105
      %p107 = scmp.ne.s32.totalorder %s98, %s99
      %p108 = scmp.eq.s32.totalorder %s25, 0
      %p109 = por %p107, %p108
      %p110 = scmp.ne.s32.totalorder %s98, %s99
      %p111 = scmp.eq.s32.totalorder %s26, 1
      %p112 = por %p110, %p111
      %p114 = scmp.ne.s32.totalorder %s99, %s113
      %p115 = scmp.eq.s32.totalorder %s26, 0
      %p116 = por %p114, %p115
      %s118 = sadd.s32 %s117, 1
      %p121 = scmp.eq.s32.totalorder %s20, 1
      %p122 = scmp.ne.s32.totalorder %s117, %s119
      %p123 = scmp.eq.s32.totalorder %s20, 0
      %p124 = por %p122, %p123
      %p125 = scmp.ne.s32.totalorder %s117, %s119
      %p126 = scmp.eq.s32.totalorder %s25, 1
      %p127 = por %p125, %p126
      %p128 = scmp.ne.s32.totalorder %s119, %s120
      %p129 = scmp.eq.s32.totalorder %s25, 0
      %p130 = por %p128, %p129
      %p131 = scmp.ne.s32.totalorder %s119, %s120
      %p132 = scmp.eq.s32.totalorder %s26, 1
      %p133 = por %p131, %p132
      %p135 = scmp.ne.s32.totalorder %s120, %s134
      %p136 = scmp.eq.s32.totalorder %s26, 0
      %p137 = por %p135, %p136
      %s139 = sadd.s32 %s138, 1
      %p142 = scmp.eq.s32.totalorder %s20, 1
      %p143 = scmp.ne.s32.totalorder %s138, %s140
      %p144 = scmp.eq.s32.totalorder %s20, 0
      %p145 = por %p143, %p144
      %p146 = scmp.ne.s32.totalorder %s138, %s140
      %p147 = scmp.eq.s32.totalorder %s25, 1
      %p148 = por %p146, %p147
      %p149 = scmp.ne.s32.totalorder %s140, %s141
      %p150 = scmp.eq.s32.totalorder %s25, 0
      %p151 = por %p149, %p150
      %p152 = scmp.ne.s32.totalorder %s140, %s141
      %p153 = scmp.eq.s32.totalorder %s26, 1
      %p154 = por %p152, %p153
      %p156 = scmp.ne.s32.totalorder %s141, %s155
      %p157 = scmp.eq.s32.totalorder %s26, 0
      %p158 = por %p156, %p157
      %s160 = sadd.s32 %s159, 1
      %p163 = scmp.eq.s32.totalorder %s20, 1
      %p164 = scmp.ne.s32.totalorder %s159, %s161
      %p165 = scmp.eq.s32.totalorder %s20, 0
      %p166 = por %p164, %p165
      %p167 = scmp.ne.s32.totalorder %s159, %s161
      %p168 = scmp.eq.s32.totalorder %s25, 1
      %p169 = por %p167, %p168
      %p170 = scmp.ne.s32.totalorder %s161, %s162
      %p171 = scmp.eq.s32.totalorder %s25, 0
      %p172 = por %p170, %p171
      %p173 = scmp.ne.s32.totalorder %s161, %s162
      %p174 = scmp.eq.s32.totalorder %s26, 1
      %p175 = por %p173, %p174
      %p177 = scmp.ne.s32.totalorder %s162, %s176
      %p178 = scmp.eq.s32.totalorder %s26, 0
      %p179 = por %p177, %p178
      %s180 = ssub.s32 %s20, %s27
      %p181 = scmp.eq.s32.totalorder %s180, 0
      %s183 = sadd.s32 %s182, 1
      %s184 = scalar_select %p181, %s182, %s183
      %p187 = pneg %p181
      %p188 = scmp.eq.s32.totalorder %s20, 1
      %p189 = por %p187, %p188
      %p190 = scmp.ne.s32.totalorder %s182, %s185
      %p191 = scmp.eq.s32.totalorder %s20, 0
      %p192 = por %p190, %p191
      %p193 = scmp.ne.s32.totalorder %s182, %s185
      %p194 = scmp.eq.s32.totalorder %s25, 1
      %p195 = por %p193, %p194
      %p196 = scmp.ne.s32.totalorder %s185, %s186
      %p197 = scmp.eq.s32.totalorder %s25, 0
      %p198 = por %p196, %p197
      %p199 = scmp.ne.s32.totalorder %s185, %s186
      %p200 = scmp.eq.s32.totalorder %s26, 1
      %p201 = por %p199, %p200
      %p203 = scmp.ne.s32.totalorder %s186, %s202
      %p204 = scmp.eq.s32.totalorder %s26, 0
      %p205 = por %p203, %p204
      %p206 = scmp.le.s32.totalorder 1, %s20
      %p207 = scmp.lt.s32.totalorder %s20, 3
      %p208 = pnand %p206, %p207
      %p209 = pneg %p208
      // Predicated region
      $region9: #{tpu_custom_call.1} parent=5 // pred_check
        _
      $region10: #{tpu_custom_call.1} parent=5 // pred_check_branch
        %211 = sbr.rel (%p208) target = $region12
      $region11: #{tpu_custom_call.1} parent=5 // pred_region
        %s212 = ssub.s32 %s20, 1
        // Predicated region
        $region13: #{tpu_custom_call.1} parent=11 // pred_check
          %p213 = pneg %p67
        $region14: #{tpu_custom_call.1} parent=11 // pred_check_branch
          %215 = sbr.rel (%p213) target = $region16
        $region15: #{tpu_custom_call.1} parent=11 // pred_region
          _
        $region16: #{tpu_custom_call.1} parent=11 // pred_fallthru
          _
        // Predicated region
        $region17: #{tpu_custom_call.1} parent=11 // pred_check
          %p216 = pneg %p88
        $region18: #{tpu_custom_call.1} parent=11 // pred_check_branch
          %218 = sbr.rel (%p216) target = $region20
        $region19: #{tpu_custom_call.1} parent=11 // pred_region
          _
        $region20: #{tpu_custom_call.1} parent=11 // pred_fallthru
          _
        // Predicated region
        $region21: #{tpu_custom_call.1} parent=11 // pred_check
          %p219 = pneg %p109
        $region22: #{tpu_custom_call.1} parent=11 // pred_check_branch
          %221 = sbr.rel (%p219) target = $region24
        $region23: #{tpu_custom_call.1} parent=11 // pred_region
          %s223 = ssub.s32 6912, 6912
          %224 = vsyncadd [#allocation7], %s223
          %s225 = sshll.u32 [#allocation6], 4
          %s226 = int_to_ptr.vmem [resolvable:$true] %s225
          %231 = dma.hbm_to_vmem [thread:$0]  %s3, 6912, %s226, [#allocation7], 256, 256, 16
        $region24: #{tpu_custom_call.1} parent=11 // pred_fallthru
          _
        // Predicated region
        $region25: #{tpu_custom_call.1} parent=11 // pred_check
          %p232 = pneg %p130
        $region26: #{tpu_custom_call.1} parent=11 // pred_check_branch
          %234 = sbr.rel (%p232) target = $region28
        $region27: #{tpu_custom_call.1} parent=11 // pred_region
          _
        $region28: #{tpu_custom_call.1} parent=11 // pred_fallthru
          _
        // Predicated region
        $region29: #{tpu_custom_call.1} parent=11 // pred_check
          %p235 = pneg %p151
        $region30: #{tpu_custom_call.1} parent=11 // pred_check_branch
          %237 = sbr.rel (%p235) target = $region32
        $region31: #{tpu_custom_call.1} parent=11 // pred_region
          %s239 = ssub.s32 128, 128
          %240 = vsyncadd [#allocation7], %s239
          %s242 = sshll.u32 [#allocation8], 4
          %s243 = int_to_ptr.vmem [resolvable:$true] %s242
          %245 = dma.hbm_to_vmem [thread:$0]  %s5, 128, %s243, [#allocation7]
        $region32: #{tpu_custom_call.1} parent=11 // pred_fallthru
          _
        // Predicated region
        $region33: #{tpu_custom_call.1} parent=11 // pred_check
          %p246 = pneg %p172
        $region34: #{tpu_custom_call.1} parent=11 // pred_check_branch
          %248 = sbr.rel (%p246) target = $region36
        $region35: #{tpu_custom_call.1} parent=11 // pred_region
          _
        $region36: #{tpu_custom_call.1} parent=11 // pred_fallthru
          _
      $region12: #{tpu_custom_call.1} parent=5 // pred_fallthru
        _
      %p249 = scmp.lt.s32.totalorder %s20, 2
      // Predicated region
      $region37: #{tpu_custom_call.1} parent=5 // pred_check
        %p250 = pneg %p249
      $region38: #{tpu_custom_call.1} parent=5 // pred_check_branch
        %252 = sbr.rel (%p250) target = $region40
      $region39: #{tpu_custom_call.1} parent=5 // pred_region
        // Predicated region
        $region41: #{tpu_custom_call.1} parent=39 // pred_check
          %p253 = pneg %p40
        $region42: #{tpu_custom_call.1} parent=39 // pred_check_branch
          %255 = sbr.rel (%p253) target = $region44
        $region43: #{tpu_custom_call.1} parent=39 // pred_region
          %s256 = sand.u32 %s30, 1
          %s257 = scalar_lea.sflag [#allocation4], %s256
          %s258 = sand.u32 %s30, 1
          %s259 = smul.addr %s258, 8
          %s260 = scalar_lea.vmem [#allocation3], %s259
          %s262 = ssub.s32 128, 128
          %263 = vsyncadd %s257, %s262
          %s264 = smul.addr %s20, 2
          %s265 = smul.addr %s264, 64
          %s266 = scalar_lea.hbm %s0, %s265
          %s268 = sshll.u32 %s260, 4
          %s269 = int_to_ptr.vmem [resolvable:$true] %s268
          %271 = dma.hbm_to_vmem [thread:$0]  %s266, 128, %s269, %s257
        $region44: #{tpu_custom_call.1} parent=39 // pred_fallthru
          _
      $region40: #{tpu_custom_call.1} parent=5 // pred_fallthru
        _
      %p272 = scmp.le.s32.totalorder 1, %s20
      %p273 = scmp.lt.s32.totalorder %s20, 3
      %p274 = pnand %p272, %p273
      %p275 = pneg %p274
      // Predicated region
      $region45: #{tpu_custom_call.1} parent=5 // pred_check
        _
      $region46: #{tpu_custom_call.1} parent=5 // pred_check_branch
        %277 = sbr.rel (%p274) target = $region48
      $region47: #{tpu_custom_call.1} parent=5 // pred_region
        %s278 = ssub.s32 %s20, 1
        %s279 = sand.u32 %s33, 1
        %s280 = scalar_lea.sflag [#allocation4], %s279
        %s281 = sand.u32 %s33, 1
        %s282 = smul.addr %s281, 8
        %s283 = scalar_lea.vmem [#allocation3], %s282
        // Predicated region
        $region49: #{tpu_custom_call.1} parent=47 // pred_check
          %p284 = pneg %p46
        $region50: #{tpu_custom_call.1} parent=47 // pred_check_branch
          %286 = sbr.rel (%p284) target = $region52
        $region51: #{tpu_custom_call.1} parent=47 // pred_region
          %287 = dma.done %s280, 128
        $region52: #{tpu_custom_call.1} parent=47 // pred_fallthru
          _
        // Predicated region
        $region53: #{tpu_custom_call.1} parent=47 // pred_check
          %p288 = pneg %p109
        $region54: #{tpu_custom_call.1} parent=47 // pred_check_branch
          %290 = sbr.rel (%p288) target = $region56
        $region55: #{tpu_custom_call.1} parent=47 // pred_region
          %291 = dma.done [#allocation7], 6912
        $region56: #{tpu_custom_call.1} parent=47 // pred_fallthru
          _
        // Predicated region
        $region57: #{tpu_custom_call.1} parent=47 // pred_check
          %p292 = pneg %p151
        $region58: #{tpu_custom_call.1} parent=47 // pred_check_branch
          %294 = sbr.rel (%p292) target = $region60
        $region59: #{tpu_custom_call.1} parent=47 // pred_region
          %295 = dma.done [#allocation7], 128
        $region60: #{tpu_custom_call.1} parent=47 // pred_fallthru
          _
        %s296 = sand.u32 %s33, 1
        %s297 = scalar_lea.sflag [#allocation4], %s296
        %s298 = sand.u32 %s33, 1
        %s299 = smul.addr %s298, 8
        %s300 = scalar_lea.vmem [#allocation3], %s299
        %p301 = pneg %p46
        %p302 = pneg %p43
        %p303 = pneg %p67
        %p304 = pneg %p64
        %p305 = pneg %p88
        %p306 = pneg %p85
        %p307 = pneg %p109
        %p308 = pneg %p106
        %p309 = pneg %p130
        %p310 = pneg %p127
        %p311 = pneg %p151
        %p312 = pneg %p148
        %p313 = pneg %p172
        %p314 = pneg %p169
        %p315 = pneg %p198
        %p316 = pneg %p195
        %s317 = sand.u32 %s185, 1
        %s318 = scalar_lea.sflag [#allocation5], %s317
        %s319 = sand.u32 %s185, 1
        %s320 = smul.addr %s319, 16
        %s321 = scalar_lea.vmem [#allocation9], %s320
        %v322 = vld [vmem:[%s283] sm:$0xff]
        %v323 = vld [vmem:[%s1] sm:$0xff]
        %v324 = vld [vmem:[%s2] sm:$0xff]
        %326 = vset.pattern.permute.xlu0 0
        %327 = vperm.xlu0 %326, %v324
        %v328 = vpop.permute.xlu0 %327
        %v331 = vcombine.high %v322, %v322
        %vm332 = vcmask 31744
        %v334 = vsel %vm332, %v323, 0
        %vm336 = vcmask 1043456
        %v337 = vsel %vm336, %v322, 0
        %v339 = vsel %vm336, %v331, 0
        %341 = vmatprep.subr.mxu0 %v339
        %342 = vmatpush1.msra.mxu0 %v337
        %343 = vmatprep.subr.mxu0 0.0
        %344 = vmatpush1.msra.mxu0 0.0
        %345 = vmatprep.subr.mxu0 0.0
        %346 = vmatpush1.msra.mxu0 0.0
        %347 = vmatprep.subr.mxu0 0.0
        %348 = vmatpush1.msra.mxu0 0.0
        %349 = vmatprep.subr.mxu0 0.0
        %350 = vmatpush1.msra.mxu0 0.0
        %351 = vmatprep.subr.mxu0 0.0
        %352 = vmatpush1.msra.mxu0 0.0
        %353 = vmatprep.subr.mxu0 0.0
        %354 = vmatpush1.msra.mxu0 0.0
        %355 = vmatprep.subr.mxu0 0.0
        %356 = vmatpush1.msra.mxu0 0.0
        %357 = vmatprep.subr.mxu0 0.0
        %358 = vmatpush1.msra.mxu0 0.0
        %359 = vmatprep.subr.mxu0 0.0
        %360 = vmatpush1.msra.mxu0 0.0
        %361 = vmatprep.subr.mxu0 0.0
        %362 = vmatpush1.msra.mxu0 0.0
        %363 = vmatprep.subr.mxu0 0.0
        %364 = vmatpush1.msra.mxu0 0.0
        %365 = vmatprep.subr.mxu0 0.0
        %366 = vmatpush1.msra.mxu0 0.0
        %367 = vmatprep.subr.mxu0 0.0
        %368 = vmatpush1.msra.mxu0 0.0
        %369 = vmatprep.subr.mxu0 0.0
        %370 = vmatpush1.msra.mxu0 0.0
        %371 = vmatprep.subr.mxu0 0.0
        %372 = vmatpush1.msra.mxu0 0.0
        %373 = vmatprep.subr.mxu0 0.0
        %374 = vmatpush1.msra.mxu0 0.0
        %375 = vmatprep.subr.mxu0 0.0
        %376 = vmatpush1.msra.mxu0 0.0
        %377 = vmatprep.subr.mxu0 0.0
        %378 = vmatpush1.msra.mxu0 0.0
        %379 = vmatprep.subr.mxu0 0.0
        %380 = vmatpush1.msra.mxu0 0.0
        %381 = vmatprep.subr.mxu0 0.0
        %382 = vmatpush1.msra.mxu0 0.0
        %383 = vmatprep.subr.mxu0 0.0
        %384 = vmatpush1.msra.mxu0 0.0
        %385 = vmatprep.subr.mxu0 0.0
        %386 = vmatpush1.msra.mxu0 0.0
        %387 = vmatprep.subr.mxu0 0.0
        %388 = vmatpush1.msra.mxu0 0.0
        %389 = vmatprep.subr.mxu0 0.0
        %390 = vmatpush1.msra.mxu0 0.0
        %391 = vmatprep.subr.mxu0 0.0
        %392 = vmatpush1.msra.mxu0 0.0
        %393 = vmatprep.subr.mxu0 0.0
        %394 = vmatpush1.msra.mxu0 0.0
        %395 = vmatprep.subr.mxu0 0.0
        %396 = vmatpush1.msra.mxu0 0.0
        %397 = vmatprep.subr.mxu0 0.0
        %398 = vmatpush1.msra.mxu0 0.0
        %399 = vmatprep.subr.mxu0 0.0
        %400 = vmatpush1.msra.mxu0 0.0
        %401 = vmatprep.subr.mxu0 0.0
        %402 = vmatpush1.msra.mxu0 0.0
        %403 = vmatprep.subr.mxu0 0.0
        %404 = vmatpush1.msra.mxu0 0.0
        %405 = vmatprep.mubr.f32.mxu0 0.0
        %406 = vmatmul.mubr.f32.gmra.mrb[0].mxu0 %v334
        %v407 = vpop.f32.mrb[0].mxu0
        %v408 = vadd.f32 %v328, %v407
        %v409 = vpop.f32.mrb[0].mxu0
        %v410 = vadd.f32 %v328, %v409
        %411 = vdwg.mxu0
        %v412 = vmax.f32 %v408, 0.0
        %v413 = vmax.f32 %v410, 0.0
        %s414 = scalar_lea.vmem [#allocation6], 64
        %v415 = vld [vmem:[%s414] sm:$0xff]
        %v416 = vld [vmem:[%s414 + $0x8] sm:$0xff]
        %v417 = vmul.f32 %v412, %v415
        %v418 = vmul.f32 %v413, %v416
        %419 = vrot.lane.b32.xlu0 %v412, 17
        %v420 = vpop.permute.xlu0 %419
        %421 = vrot.lane.b32.xlu0 %v413, 17
        %v422 = vpop.permute.xlu0 %421
        %v423 = vlaneseq
        %v424 = vand.u32 %v423, 127
        %vm425 = vcmp.lt.s32.totalorder %v424, 17
        %v426 = vsel %vm425, %v420, %v422
        %v427 = vsel %vm425, %v422, %v420
        %v428 = vld [vmem:[#allocation6] sm:$0xff]
        %v429 = vld [vmem:[#allocation6 + $0x8] sm:$0xff]
        %v430 = vmul.f32 %v427, %v428
        %v431 = vmul.f32 %v426, %v429
        %v432 = vadd.f32 %v417, %v430
        %v433 = vadd.f32 %v418, %v431
        %434 = vrot.lane.b32.xlu0 %v412, 16
        %v435 = vpop.permute.xlu0 %434
        %436 = vrot.lane.b32.xlu0 %v413, 16
        %v437 = vpop.permute.xlu0 %436
        %vm438 = vcmp.lt.s32.totalorder %v424, 16
        %v439 = vsel %vm438, %v435, %v437
        %v440 = vsel %vm438, %v437, %v435
        %s441 = scalar_lea.vmem [#allocation6], 16
        %v442 = vld [vmem:[%s441] sm:$0xff]
        %v443 = vld [vmem:[%s441 + $0x8] sm:$0xff]
        %v444 = vmul.f32 %v440, %v442
        %v445 = vmul.f32 %v439, %v443
        %v446 = vadd.f32 %v432, %v444
        %v447 = vadd.f32 %v433, %v445
        %448 = vrot.lane.b32.xlu0 %v412, 15
        %v449 = vpop.permute.xlu0 %448
        %450 = vrot.lane.b32.xlu0 %v413, 15
        %v451 = vpop.permute.xlu0 %450
        %vm452 = vcmp.lt.s32.totalorder %v424, 15
        %v453 = vsel %vm452, %v449, %v451
        %v454 = vsel %vm452, %v451, %v449
        %s455 = scalar_lea.vmem [#allocation6], 32
        %v456 = vld [vmem:[%s455] sm:$0xff]
        %v457 = vld [vmem:[%s455 + $0x8] sm:$0xff]
        %v458 = vmul.f32 %v454, %v456
        %v459 = vmul.f32 %v453, %v457
        %v460 = vadd.f32 %v446, %v458
        %v461 = vadd.f32 %v447, %v459
        %462 = vrot.lane.b32.xlu0 %v412, 1
        %v463 = vpop.permute.xlu0 %462
        %464 = vrot.lane.b32.xlu0 %v413, 1
        %v465 = vpop.permute.xlu0 %464
        %vm466 = vcmp.lt.s32.totalorder %v424, 1
        %v467 = vsel %vm466, %v463, %v465
        %v468 = vsel %vm466, %v465, %v463
        %s469 = scalar_lea.vmem [#allocation6], 48
        %v470 = vld [vmem:[%s469] sm:$0xff]
        %v471 = vld [vmem:[%s469 + $0x8] sm:$0xff]
        %v472 = vmul.f32 %v468, %v470
        %v473 = vmul.f32 %v467, %v471
        %v474 = vadd.f32 %v460, %v472
        %v475 = vadd.f32 %v461, %v473
        %476 = vrot.lane.b32.xlu0 %v412, 127
        %v477 = vpop.permute.xlu0 %476
        %478 = vrot.lane.b32.xlu0 %v413, 127
        %v479 = vpop.permute.xlu0 %478
        %vm480 = vcmp.lt.s32.totalorder %v424, 127
        %v481 = vsel %vm480, %v477, %v479
        %v482 = vsel %vm480, %v479, %v477
        %s483 = scalar_lea.vmem [#allocation6], 80
        %v484 = vld [vmem:[%s483] sm:$0xff]
        %v485 = vld [vmem:[%s483 + $0x8] sm:$0xff]
        %v486 = vmul.f32 %v481, %v484
        %v487 = vmul.f32 %v482, %v485
        %v488 = vadd.f32 %v474, %v486
        %v489 = vadd.f32 %v475, %v487
        %490 = vrot.lane.b32.xlu0 %v412, 113
        %v491 = vpop.permute.xlu0 %490
        %492 = vrot.lane.b32.xlu0 %v413, 113
        %v493 = vpop.permute.xlu0 %492
        %vm494 = vcmp.lt.s32.totalorder %v424, 113
        %v495 = vsel %vm494, %v491, %v493
        %v496 = vsel %vm494, %v493, %v491
        %s497 = scalar_lea.vmem [#allocation6], 96
        %v498 = vld [vmem:[%s497] sm:$0xff]
        %v499 = vld [vmem:[%s497 + $0x8] sm:$0xff]
        %v500 = vmul.f32 %v495, %v498
        %v501 = vmul.f32 %v496, %v499
        %v502 = vadd.f32 %v488, %v500
        %v503 = vadd.f32 %v489, %v501
        %504 = vrot.lane.b32.xlu0 %v412, 112
        %v505 = vpop.permute.xlu0 %504
        %506 = vrot.lane.b32.xlu0 %v413, 112
        %v507 = vpop.permute.xlu0 %506
        %vm508 = vcmp.lt.s32.totalorder %v424, 112
        %v509 = vsel %vm508, %v505, %v507
        %v510 = vsel %vm508, %v507, %v505
        %s511 = scalar_lea.vmem [#allocation6], 112
        %v512 = vld [vmem:[%s511] sm:$0xff]
        %v513 = vld [vmem:[%s511 + $0x8] sm:$0xff]
        %v514 = vmul.f32 %v509, %v512
        %v515 = vmul.f32 %v510, %v513
        %v516 = vadd.f32 %v502, %v514
        %v517 = vadd.f32 %v503, %v515
        %518 = vrot.lane.b32.xlu0 %v412, 111
        %v519 = vpop.permute.xlu0 %518
        %520 = vrot.lane.b32.xlu0 %v413, 111
        %v521 = vpop.permute.xlu0 %520
        %vm522 = vcmp.lt.s32.totalorder %v424, 111
        %v523 = vsel %vm522, %v519, %v521
        %v524 = vsel %vm522, %v521, %v519
        %s525 = scalar_lea.vmem [#allocation6], 128
        %v526 = vld [vmem:[%s525] sm:$0xff]
        %v527 = vld [vmem:[%s525 + $0x8] sm:$0xff]
        %v528 = vmul.f32 %v523, %v526
        %v529 = vmul.f32 %v524, %v527
        %v530 = vadd.f32 %v516, %v528
        %v531 = vadd.f32 %v517, %v529
        %vm532 = vcmp.gt.f32.partialorder %v530, 0.0
        %vm533 = vcmp.gt.f32.partialorder %v531, 0.0
        %v534 = vmin.f32 %v530, 0.0
        %v535 = vmin.f32 %v531, 0.0
        %v536 = vmul.f32 %v534, 1.442695
        %v537 = vpow.pop %v536
        %v538 = vmul.f32 %v535, 1.442695
        %v539 = vpow.pop %v538
        %v540 = vsub.f32 %v537, 1.0
        %v541 = vsub.f32 %v539, 1.0
        %v542 = vsel %vm532, %v530, %v540
        %v543 = vsel %vm533, %v531, %v541
        %v544 = vld [vmem:[%s4] sm:$0xff]
        %vm545 = vcmask 64512
        %v547 = vsel %vm545, %v544, 0
        %549 = vmatprep.subr.mxu0 %v543
        %550 = vmatpush1.msra.mxu0 %v542
        %551 = vmatprep.subr.mxu0 0.0
        %552 = vmatpush1.msra.mxu0 0.0
        %553 = vmatprep.subr.mxu0 0.0
        %554 = vmatpush1.msra.mxu0 0.0
        %555 = vmatprep.subr.mxu0 0.0
        %556 = vmatpush1.msra.mxu0 0.0
        %557 = vmatprep.subr.mxu0 0.0
        %558 = vmatpush1.msra.mxu0 0.0
        %559 = vmatprep.subr.mxu0 0.0
        %560 = vmatpush1.msra.mxu0 0.0
        %561 = vmatprep.subr.mxu0 0.0
        %562 = vmatpush1.msra.mxu0 0.0
        %563 = vmatprep.subr.mxu0 0.0
        %564 = vmatpush1.msra.mxu0 0.0
        %565 = vmatprep.subr.mxu0 0.0
        %566 = vmatpush1.msra.mxu0 0.0
        %567 = vmatprep.subr.mxu0 0.0
        %568 = vmatpush1.msra.mxu0 0.0
        %569 = vmatprep.subr.mxu0 0.0
        %570 = vmatpush1.msra.mxu0 0.0
        %571 = vmatprep.subr.mxu0 0.0
        %572 = vmatpush1.msra.mxu0 0.0
        %573 = vmatprep.subr.mxu0 0.0
        %574 = vmatpush1.msra.mxu0 0.0
        %575 = vmatprep.subr.mxu0 0.0
        %576 = vmatpush1.msra.mxu0 0.0
        %577 = vmatprep.subr.mxu0 0.0
        %578 = vmatpush1.msra.mxu0 0.0
        %579 = vmatprep.subr.mxu0 0.0
        %580 = vmatpush1.msra.mxu0 0.0
        %581 = vmatprep.subr.mxu0 0.0
        %582 = vmatpush1.msra.mxu0 0.0
        %583 = vmatprep.subr.mxu0 0.0
        %584 = vmatpush1.msra.mxu0 0.0
        %585 = vmatprep.subr.mxu0 0.0
        %586 = vmatpush1.msra.mxu0 0.0
        %587 = vmatprep.subr.mxu0 0.0
        %588 = vmatpush1.msra.mxu0 0.0
        %589 = vmatprep.subr.mxu0 0.0
        %590 = vmatpush1.msra.mxu0 0.0
        %591 = vmatprep.subr.mxu0 0.0
        %592 = vmatpush1.msra.mxu0 0.0
        %593 = vmatprep.subr.mxu0 0.0
        %594 = vmatpush1.msra.mxu0 0.0
        %595 = vmatprep.subr.mxu0 0.0
        %596 = vmatpush1.msra.mxu0 0.0
        %597 = vmatprep.subr.mxu0 0.0
        %598 = vmatpush1.msra.mxu0 0.0
        %599 = vmatprep.subr.mxu0 0.0
        %600 = vmatpush1.msra.mxu0 0.0
        %601 = vmatprep.subr.mxu0 0.0
        %602 = vmatpush1.msra.mxu0 0.0
        %603 = vmatprep.subr.mxu0 0.0
        %604 = vmatpush1.msra.mxu0 0.0
        %605 = vmatprep.subr.mxu0 0.0
        %606 = vmatpush1.msra.mxu0 0.0
        %607 = vmatprep.subr.mxu0 0.0
        %608 = vmatpush1.msra.mxu0 0.0
        %609 = vmatprep.subr.mxu0 0.0
        %610 = vmatpush1.msra.mxu0 0.0
        %611 = vmatprep.subr.mxu0 0.0
        %612 = vmatpush1.msra.mxu0 0.0
        %613 = vmatprep.mubr.f32.mxu0 0.0
        %614 = vmatmul.mubr.f32.gmra.mrb[0].mxu0 %v547
        %v615 = vpop.f32.mrb[0].mxu0
        %v616 = vadd.f32 0.0, %v615
        %v617 = vpop.f32.mrb[0].mxu0
        %v618 = vadd.f32 0.0, %v617
        %619 = vdwg.mxu0
        %vm620 = vcmp.gt.f32.partialorder %v616, 0.0
        %vm621 = vcmp.gt.f32.partialorder %v618, 0.0
        %v622 = vmin.f32 %v616, 0.0
        %v623 = vmin.f32 %v618, 0.0
        %v624 = vmul.f32 %v622, 1.442695
        %v625 = vpow.pop %v624
        %v626 = vmul.f32 %v623, 1.442695
        %v627 = vpow.pop %v626
        %v628 = vsub.f32 %v625, 1.0
        %v629 = vsub.f32 %v627, 1.0
        %v630 = vsel %vm620, %v616, %v628
        %v631 = vsel %vm621, %v618, %v629
        %s632 = scalar_lea.vmem [#allocation6], 208
        %v633 = vld [vmem:[%s632] sm:$0xff]
        %v634 = vld [vmem:[%s632 + $0x8] sm:$0xff]
        %v635 = vmul.f32 %v630, %v633
        %v636 = vmul.f32 %v631, %v634
        %637 = vrot.lane.b32.xlu0 %v630, 17
        %v638 = vpop.permute.xlu0 %637
        %639 = vrot.lane.b32.xlu0 %v631, 17
        %v640 = vpop.permute.xlu0 %639
        %v641 = vsel %vm425, %v638, %v640
        %v642 = vsel %vm425, %v640, %v638
        %s643 = scalar_lea.vmem [#allocation6], 144
        %v644 = vld [vmem:[%s643] sm:$0xff]
        %v645 = vld [vmem:[%s643 + $0x8] sm:$0xff]
        %v646 = vmul.f32 %v642, %v644
        %v647 = vmul.f32 %v641, %v645
        %v648 = vadd.f32 %v635, %v646
        %v649 = vadd.f32 %v636, %v647
        %650 = vrot.lane.b32.xlu0 %v630, 16
        %v651 = vpop.permute.xlu0 %650
        %652 = vrot.lane.b32.xlu0 %v631, 16
        %v653 = vpop.permute.xlu0 %652
        %v654 = vsel %vm438, %v651, %v653
        %v655 = vsel %vm438, %v653, %v651
        %s656 = scalar_lea.vmem [#allocation6], 160
        %v657 = vld [vmem:[%s656] sm:$0xff]
        %v658 = vld [vmem:[%s656 + $0x8] sm:$0xff]
        %v659 = vmul.f32 %v655, %v657
        %v660 = vmul.f32 %v654, %v658
        %v661 = vadd.f32 %v648, %v659
        %v662 = vadd.f32 %v649, %v660
        %663 = vrot.lane.b32.xlu0 %v630, 15
        %v664 = vpop.permute.xlu0 %663
        %665 = vrot.lane.b32.xlu0 %v631, 15
        %v666 = vpop.permute.xlu0 %665
        %v667 = vsel %vm452, %v664, %v666
        %v668 = vsel %vm452, %v666, %v664
        %s669 = scalar_lea.vmem [#allocation6], 176
        %v670 = vld [vmem:[%s669] sm:$0xff]
        %v671 = vld [vmem:[%s669 + $0x8] sm:$0xff]
        %v672 = vmul.f32 %v668, %v670
        %v673 = vmul.f32 %v667, %v671
        %v674 = vadd.f32 %v661, %v672
        %v675 = vadd.f32 %v662, %v673
        %676 = vrot.lane.b32.xlu0 %v630, 1
        %v677 = vpop.permute.xlu0 %676
        %678 = vrot.lane.b32.xlu0 %v631, 1
        %v679 = vpop.permute.xlu0 %678
        %v680 = vsel %vm466, %v677, %v679
        %v681 = vsel %vm466, %v679, %v677
        %s682 = scalar_lea.vmem [#allocation6], 192
        %v683 = vld [vmem:[%s682] sm:$0xff]
        %v684 = vld [vmem:[%s682 + $0x8] sm:$0xff]
        %v685 = vmul.f32 %v681, %v683
        %v686 = vmul.f32 %v680, %v684
        %v687 = vadd.f32 %v674, %v685
        %v688 = vadd.f32 %v675, %v686
        %689 = vrot.lane.b32.xlu0 %v630, 127
        %v690 = vpop.permute.xlu0 %689
        %691 = vrot.lane.b32.xlu0 %v631, 127
        %v692 = vpop.permute.xlu0 %691
        %v693 = vsel %vm480, %v690, %v692
        %v694 = vsel %vm480, %v692, %v690
        %s695 = scalar_lea.vmem [#allocation6], 224
        %v696 = vld [vmem:[%s695] sm:$0xff]
        %v697 = vld [vmem:[%s695 + $0x8] sm:$0xff]
        %v698 = vmul.f32 %v693, %v696
        %v699 = vmul.f32 %v694, %v697
        %v700 = vadd.f32 %v687, %v698
        %v701 = vadd.f32 %v688, %v699
        %702 = vrot.lane.b32.xlu0 %v630, 113
        %v703 = vpop.permute.xlu0 %702
        %704 = vrot.lane.b32.xlu0 %v631, 113
        %v705 = vpop.permute.xlu0 %704
        %v706 = vsel %vm494, %v703, %v705
        %v707 = vsel %vm494, %v705, %v703
        %s708 = scalar_lea.vmem [#allocation6], 240
        %v709 = vld [vmem:[%s708] sm:$0xff]
        %v710 = vld [vmem:[%s708 + $0x8] sm:$0xff]
        %v711 = vmul.f32 %v706, %v709
        %v712 = vmul.f32 %v707, %v710
        %v713 = vadd.f32 %v700, %v711
        %v714 = vadd.f32 %v701, %v712
        %715 = vrot.lane.b32.xlu0 %v630, 112
        %v716 = vpop.permute.xlu0 %715
        %717 = vrot.lane.b32.xlu0 %v631, 112
        %v718 = vpop.permute.xlu0 %717
        %v719 = vsel %vm508, %v716, %v718
        %v720 = vsel %vm508, %v718, %v716
        %s721 = scalar_lea.vmem [#allocation6], 256
        %v722 = vld [vmem:[%s721] sm:$0xff]
        %v723 = vld [vmem:[%s721 + $0x8] sm:$0xff]
        %v724 = vmul.f32 %v719, %v722
        %v725 = vmul.f32 %v720, %v723
        %v726 = vadd.f32 %v713, %v724
        %v727 = vadd.f32 %v714, %v725
        %728 = vrot.lane.b32.xlu0 %v630, 111
        %v729 = vpop.permute.xlu0 %728
        %730 = vrot.lane.b32.xlu0 %v631, 111
        %v731 = vpop.permute.xlu0 %730
        %v732 = vsel %vm522, %v729, %v731
        %v733 = vsel %vm522, %v731, %v729
        %s734 = scalar_lea.vmem [#allocation6], 272
        %v735 = vld [vmem:[%s734] sm:$0xff]
        %v736 = vld [vmem:[%s734 + $0x8] sm:$0xff]
        %v737 = vmul.f32 %v732, %v735
        %v738 = vmul.f32 %v733, %v736
        %v739 = vadd.f32 %v726, %v737
        %v740 = vadd.f32 %v727, %v738
        %vm741 = vcmp.gt.f32.partialorder %v739, 0.0
        %vm742 = vcmp.gt.f32.partialorder %v740, 0.0
        %v743 = vmin.f32 %v739, 0.0
        %v744 = vmin.f32 %v740, 0.0
        %v745 = vmul.f32 %v743, 1.442695
        %v746 = vpow.pop %v745
        %v747 = vmul.f32 %v744, 1.442695
        %v748 = vpow.pop %v747
        %v749 = vsub.f32 %v746, 1.0
        %v750 = vsub.f32 %v748, 1.0
        %v751 = vsel %vm741, %v739, %v749
        %v752 = vsel %vm742, %v740, %v750
        %s753 = scalar_lea.vmem %s4, 8
        %v754 = vld [vmem:[%s753] sm:$0xff]
        %v756 = vsel %vm545, %v754, 0
        %758 = vmatprep.subr.mxu0 %v752
        %759 = vmatpush1.msra.mxu0 %v751
        %760 = vmatprep.subr.mxu0 0.0
        %761 = vmatpush1.msra.mxu0 0.0
        %762 = vmatprep.subr.mxu0 0.0
        %763 = vmatpush1.msra.mxu0 0.0
        %764 = vmatprep.subr.mxu0 0.0
        %765 = vmatpush1.msra.mxu0 0.0
        %766 = vmatprep.subr.mxu0 0.0
        %767 = vmatpush1.msra.mxu0 0.0
        %768 = vmatprep.subr.mxu0 0.0
        %769 = vmatpush1.msra.mxu0 0.0
        %770 = vmatprep.subr.mxu0 0.0
        %771 = vmatpush1.msra.mxu0 0.0
        %772 = vmatprep.subr.mxu0 0.0
        %773 = vmatpush1.msra.mxu0 0.0
        %774 = vmatprep.subr.mxu0 0.0
        %775 = vmatpush1.msra.mxu0 0.0
        %776 = vmatprep.subr.mxu0 0.0
        %777 = vmatpush1.msra.mxu0 0.0
        %778 = vmatprep.subr.mxu0 0.0
        %779 = vmatpush1.msra.mxu0 0.0
        %780 = vmatprep.subr.mxu0 0.0
        %781 = vmatpush1.msra.mxu0 0.0
        %782 = vmatprep.subr.mxu0 0.0
        %783 = vmatpush1.msra.mxu0 0.0
        %784 = vmatprep.subr.mxu0 0.0
        %785 = vmatpush1.msra.mxu0 0.0
        %786 = vmatprep.subr.mxu0 0.0
        %787 = vmatpush1.msra.mxu0 0.0
        %788 = vmatprep.subr.mxu0 0.0
        %789 = vmatpush1.msra.mxu0 0.0
        %790 = vmatprep.subr.mxu0 0.0
        %791 = vmatpush1.msra.mxu0 0.0
        %792 = vmatprep.subr.mxu0 0.0
        %793 = vmatpush1.msra.mxu0 0.0
        %794 = vmatprep.subr.mxu0 0.0
        %795 = vmatpush1.msra.mxu0 0.0
        %796 = vmatprep.subr.mxu0 0.0
        %797 = vmatpush1.msra.mxu0 0.0
        %798 = vmatprep.subr.mxu0 0.0
        %799 = vmatpush1.msra.mxu0 0.0
        %800 = vmatprep.subr.mxu0 0.0
        %801 = vmatpush1.msra.mxu0 0.0
        %802 = vmatprep.subr.mxu0 0.0
        %803 = vmatpush1.msra.mxu0 0.0
        %804 = vmatprep.subr.mxu0 0.0
        %805 = vmatpush1.msra.mxu0 0.0
        %806 = vmatprep.subr.mxu0 0.0
        %807 = vmatpush1.msra.mxu0 0.0
        %808 = vmatprep.subr.mxu0 0.0
        %809 = vmatpush1.msra.mxu0 0.0
        %810 = vmatprep.subr.mxu0 0.0
        %811 = vmatpush1.msra.mxu0 0.0
        %812 = vmatprep.subr.mxu0 0.0
        %813 = vmatpush1.msra.mxu0 0.0
        %814 = vmatprep.subr.mxu0 0.0
        %815 = vmatpush1.msra.mxu0 0.0
        %816 = vmatprep.subr.mxu0 0.0
        %817 = vmatpush1.msra.mxu0 0.0
        %818 = vmatprep.subr.mxu0 0.0
        %819 = vmatpush1.msra.mxu0 0.0
        %820 = vmatprep.subr.mxu0 0.0
        %821 = vmatpush1.msra.mxu0 0.0
        %822 = vmatprep.mubr.f32.mxu0 0.0
        %823 = vmatmul.mubr.f32.gmra.mrb[0].mxu0 %v756
        %v824 = vpop.f32.mrb[0].mxu0
        %v825 = vadd.f32 0.0, %v824
        %v826 = vpop.f32.mrb[0].mxu0
        %v827 = vadd.f32 0.0, %v826
        %828 = vdwg.mxu0
        %vm829 = vcmp.gt.f32.partialorder %v825, 0.0
        %vm830 = vcmp.gt.f32.partialorder %v827, 0.0
        %v831 = vmin.f32 %v825, 0.0
        %v832 = vmin.f32 %v827, 0.0
        %v833 = vmul.f32 %v831, 1.442695
        %v834 = vpow.pop %v833
        %v835 = vmul.f32 %v832, 1.442695
        %v836 = vpow.pop %v835
        %v837 = vsub.f32 %v834, 1.0
        %v838 = vsub.f32 %v836, 1.0
        %v839 = vsel %vm829, %v825, %v837
        %v840 = vsel %vm830, %v827, %v838
        %s841 = scalar_lea.vmem [#allocation6], 352
        %v842 = vld [vmem:[%s841] sm:$0xff]
        %v843 = vld [vmem:[%s841 + $0x8] sm:$0xff]
        %v844 = vmul.f32 %v839, %v842
        %v845 = vmul.f32 %v840, %v843
        %846 = vrot.lane.b32.xlu0 %v839, 17
        %v847 = vpop.permute.xlu0 %846
        %848 = vrot.lane.b32.xlu0 %v840, 17
        %v849 = vpop.permute.xlu0 %848
        %v850 = vsel %vm425, %v847, %v849
        %v851 = vsel %vm425, %v849, %v847
        %s852 = scalar_lea.vmem [#allocation6], 288
        %v853 = vld [vmem:[%s852] sm:$0xff]
        %v854 = vld [vmem:[%s852 + $0x8] sm:$0xff]
        %v855 = vmul.f32 %v851, %v853
        %v856 = vmul.f32 %v850, %v854
        %v857 = vadd.f32 %v844, %v855
        %v858 = vadd.f32 %v845, %v856
        %859 = vrot.lane.b32.xlu0 %v839, 16
        %v860 = vpop.permute.xlu0 %859
        %861 = vrot.lane.b32.xlu0 %v840, 16
        %v862 = vpop.permute.xlu0 %861
        %v863 = vsel %vm438, %v860, %v862
        %v864 = vsel %vm438, %v862, %v860
        %s865 = scalar_lea.vmem [#allocation6], 304
        %v866 = vld [vmem:[%s865] sm:$0xff]
        %v867 = vld [vmem:[%s865 + $0x8] sm:$0xff]
        %v868 = vmul.f32 %v864, %v866
        %v869 = vmul.f32 %v863, %v867
        %v870 = vadd.f32 %v857, %v868
        %v871 = vadd.f32 %v858, %v869
        %872 = vrot.lane.b32.xlu0 %v839, 15
        %v873 = vpop.permute.xlu0 %872
        %874 = vrot.lane.b32.xlu0 %v840, 15
        %v875 = vpop.permute.xlu0 %874
        %v876 = vsel %vm452, %v873, %v875
        %v877 = vsel %vm452, %v875, %v873
        %s878 = scalar_lea.vmem [#allocation6], 320
        %v879 = vld [vmem:[%s878] sm:$0xff]
        %v880 = vld [vmem:[%s878 + $0x8] sm:$0xff]
        %v881 = vmul.f32 %v877, %v879
        %v882 = vmul.f32 %v876, %v880
        %v883 = vadd.f32 %v870, %v881
        %v884 = vadd.f32 %v871, %v882
        %885 = vrot.lane.b32.xlu0 %v839, 1
        %v886 = vpop.permute.xlu0 %885
        %887 = vrot.lane.b32.xlu0 %v840, 1
        %v888 = vpop.permute.xlu0 %887
        %v889 = vsel %vm466, %v886, %v888
        %v890 = vsel %vm466, %v888, %v886
        %s891 = scalar_lea.vmem [#allocation6], 336
        %v892 = vld [vmem:[%s891] sm:$0xff]
        %v893 = vld [vmem:[%s891 + $0x8] sm:$0xff]
        %v894 = vmul.f32 %v890, %v892
        %v895 = vmul.f32 %v889, %v893
        %v896 = vadd.f32 %v883, %v894
        %v897 = vadd.f32 %v884, %v895
        %898 = vrot.lane.b32.xlu0 %v839, 127
        %v899 = vpop.permute.xlu0 %898
        %900 = vrot.lane.b32.xlu0 %v840, 127
        %v901 = vpop.permute.xlu0 %900
        %v902 = vsel %vm480, %v899, %v901
        %v903 = vsel %vm480, %v901, %v899
        %s904 = scalar_lea.vmem [#allocation6], 368
        %v905 = vld [vmem:[%s904] sm:$0xff]
        %v906 = vld [vmem:[%s904 + $0x8] sm:$0xff]
        %v907 = vmul.f32 %v902, %v905
        %v908 = vmul.f32 %v903, %v906
        %v909 = vadd.f32 %v896, %v907
        %v910 = vadd.f32 %v897, %v908
        %911 = vrot.lane.b32.xlu0 %v839, 113
        %v912 = vpop.permute.xlu0 %911
        %913 = vrot.lane.b32.xlu0 %v840, 113
        %v914 = vpop.permute.xlu0 %913
        %v915 = vsel %vm494, %v912, %v914
        %v916 = vsel %vm494, %v914, %v912
        %s917 = scalar_lea.vmem [#allocation6], 384
        %v918 = vld [vmem:[%s917] sm:$0xff]
        %v919 = vld [vmem:[%s917 + $0x8] sm:$0xff]
        %v920 = vmul.f32 %v915, %v918
        %v921 = vmul.f32 %v916, %v919
        %v922 = vadd.f32 %v909, %v920
        %v923 = vadd.f32 %v910, %v921
        %924 = vrot.lane.b32.xlu0 %v839, 112
        %v925 = vpop.permute.xlu0 %924
        %926 = vrot.lane.b32.xlu0 %v840, 112
        %v927 = vpop.permute.xlu0 %926
        %v928 = vsel %vm508, %v925, %v927
        %v929 = vsel %vm508, %v927, %v925
        %s930 = scalar_lea.vmem [#allocation6], 400
        %v931 = vld [vmem:[%s930] sm:$0xff]
        %v932 = vld [vmem:[%s930 + $0x8] sm:$0xff]
        %v933 = vmul.f32 %v928, %v931
        %v934 = vmul.f32 %v929, %v932
        %v935 = vadd.f32 %v922, %v933
        %v936 = vadd.f32 %v923, %v934
        %937 = vrot.lane.b32.xlu0 %v839, 111
        %v938 = vpop.permute.xlu0 %937
        %939 = vrot.lane.b32.xlu0 %v840, 111
        %v940 = vpop.permute.xlu0 %939
        %v941 = vsel %vm522, %v938, %v940
        %v942 = vsel %vm522, %v940, %v938
        %s943 = scalar_lea.vmem [#allocation6], 416
        %v944 = vld [vmem:[%s943] sm:$0xff]
        %v945 = vld [vmem:[%s943 + $0x8] sm:$0xff]
        %v946 = vmul.f32 %v941, %v944
        %v947 = vmul.f32 %v942, %v945
        %v948 = vadd.f32 %v935, %v946
        %v949 = vadd.f32 %v936, %v947
        %vm950 = vcmp.gt.f32.partialorder %v948, 0.0
        %vm951 = vcmp.gt.f32.partialorder %v949, 0.0
        %v952 = vmin.f32 %v948, 0.0
        %v953 = vmin.f32 %v949, 0.0
        %v954 = vmul.f32 %v952, 1.442695
        %v955 = vpow.pop %v954
        %v956 = vmul.f32 %v953, 1.442695
        %v957 = vpow.pop %v956
        %v958 = vsub.f32 %v955, 1.0
        %v959 = vsub.f32 %v957, 1.0
        %v960 = vsel %vm950, %v948, %v958
        %v961 = vsel %vm951, %v949, %v959
        %s962 = scalar_lea.vmem %s4, 16
        %v963 = vld [vmem:[%s962] sm:$0xff]
        %v965 = vsel %vm545, %v963, 0
        %967 = vmatprep.subr.mxu0 %v961
        %968 = vmatpush1.msra.mxu0 %v960
        %969 = vmatprep.subr.mxu0 0.0
        %970 = vmatpush1.msra.mxu0 0.0
        %971 = vmatprep.subr.mxu0 0.0
        %972 = vmatpush1.msra.mxu0 0.0
        %973 = vmatprep.subr.mxu0 0.0
        %974 = vmatpush1.msra.mxu0 0.0
        %975 = vmatprep.subr.mxu0 0.0
        %976 = vmatpush1.msra.mxu0 0.0
        %977 = vmatprep.subr.mxu0 0.0
        %978 = vmatpush1.msra.mxu0 0.0
        %979 = vmatprep.subr.mxu0 0.0
        %980 = vmatpush1.msra.mxu0 0.0
        %981 = vmatprep.subr.mxu0 0.0
        %982 = vmatpush1.msra.mxu0 0.0
        %983 = vmatprep.subr.mxu0 0.0
        %984 = vmatpush1.msra.mxu0 0.0
        %985 = vmatprep.subr.mxu0 0.0
        %986 = vmatpush1.msra.mxu0 0.0
        %987 = vmatprep.subr.mxu0 0.0
        %988 = vmatpush1.msra.mxu0 0.0
        %989 = vmatprep.subr.mxu0 0.0
        %990 = vmatpush1.msra.mxu0 0.0
        %991 = vmatprep.subr.mxu0 0.0
        %992 = vmatpush1.msra.mxu0 0.0
        %993 = vmatprep.subr.mxu0 0.0
        %994 = vmatpush1.msra.mxu0 0.0
        %995 = vmatprep.subr.mxu0 0.0
        %996 = vmatpush1.msra.mxu0 0.0
        %997 = vmatprep.subr.mxu0 0.0
        %998 = vmatpush1.msra.mxu0 0.0
        %999 = vmatprep.subr.mxu0 0.0
        %1000 = vmatpush1.msra.mxu0 0.0
        %1001 = vmatprep.subr.mxu0 0.0
        %1002 = vmatpush1.msra.mxu0 0.0
        %1003 = vmatprep.subr.mxu0 0.0
        %1004 = vmatpush1.msra.mxu0 0.0
        %1005 = vmatprep.subr.mxu0 0.0
        %1006 = vmatpush1.msra.mxu0 0.0
        %1007 = vmatprep.subr.mxu0 0.0
        %1008 = vmatpush1.msra.mxu0 0.0
        %1009 = vmatprep.subr.mxu0 0.0
        %1010 = vmatpush1.msra.mxu0 0.0
        %1011 = vmatprep.subr.mxu0 0.0
        %1012 = vmatpush1.msra.mxu0 0.0
        %1013 = vmatprep.subr.mxu0 0.0
        %1014 = vmatpush1.msra.mxu0 0.0
        %1015 = vmatprep.subr.mxu0 0.0
        %1016 = vmatpush1.msra.mxu0 0.0
        %1017 = vmatprep.subr.mxu0 0.0
        %1018 = vmatpush1.msra.mxu0 0.0
        %1019 = vmatprep.subr.mxu0 0.0
        %1020 = vmatpush1.msra.mxu0 0.0
        %1021 = vmatprep.subr.mxu0 0.0
        %1022 = vmatpush1.msra.mxu0 0.0
        %1023 = vmatprep.subr.mxu0 0.0
        %1024 = vmatpush1.msra.mxu0 0.0
        %1025 = vmatprep.subr.mxu0 0.0
        %1026 = vmatpush1.msra.mxu0 0.0
        %1027 = vmatprep.subr.mxu0 0.0
        %1028 = vmatpush1.msra.mxu0 0.0
        %1029 = vmatprep.subr.mxu0 0.0
        %1030 = vmatpush1.msra.mxu0 0.0
        %1031 = vmatprep.mubr.f32.mxu0 0.0
        %1032 = vmatmul.mubr.f32.gmra.mrb[0].mxu0 %v965
        %v1033 = vpop.f32.mrb[0].mxu0
        %v1034 = vadd.f32 0.0, %v1033
        %v1035 = vpop.f32.mrb[0].mxu0
        %v1036 = vadd.f32 0.0, %v1035
        %1037 = vdwg.mxu0
        %vm1038 = vcmp.gt.f32.partialorder %v1034, 0.0
        %vm1039 = vcmp.gt.f32.partialorder %v1036, 0.0
        %v1040 = vmin.f32 %v1034, 0.0
        %v1041 = vmin.f32 %v1036, 0.0
        %v1042 = vmul.f32 %v1040, 1.442695
        %v1043 = vpow.pop %v1042
        %v1044 = vmul.f32 %v1041, 1.442695
        %v1045 = vpow.pop %v1044
        %v1046 = vsub.f32 %v1043, 1.0
        %v1047 = vsub.f32 %v1045, 1.0
        %v1048 = vsel %vm1038, %v1034, %v1046
        %v1049 = vsel %vm1039, %v1036, %v1047
        %v1050 = vadd.f32 %v412, %v1048
        %v1051 = vadd.f32 %v413, %v1049
        %1052 = vrot.lane.b32.xlu0 %v1050, 17
        %v1053 = vpop.permute.xlu0 %1052
        %1054 = vrot.lane.b32.xlu0 %v1051, 17
        %v1055 = vpop.permute.xlu0 %1054
        %v1056 = vsel %vm425, %v1053, %v1055
        %v1057 = vsel %vm425, %v1055, %v1053
        %v1058 = vld [vmem:[%s6] sm:$0x3]
        %v1060 = vlaneseq
        %v1061 = vshrl.u32 %v1060, 7
        %v1062 = vsub.s32 0, %v1061
        %v1063 = vrot.slane %v1058, %v1062
        %v1064 = vlaneseq
        %v1065 = vshrl.u32 %v1064, 7
        %v1066 = vsub.s32 1, %v1065
        %v1067 = vrot.slane %v1058, %v1066
        %v1070 = vmul.f32 %v1057, %v1063
        %v1071 = vmul.f32 %v1056, %v1067
        %1072 = vst [vmem:[#allocation2] sm:$0xff] %v1070
        %1073 = vst [vmem:[#allocation2 + $0x8] sm:$0xff] %v1071
        %1074 = vrot.lane.b32.xlu0 %v1050, 16
        %v1075 = vpop.permute.xlu0 %1074
        %1076 = vrot.lane.b32.xlu0 %v1051, 16
        %v1077 = vpop.permute.xlu0 %1076
        %v1078 = vsel %vm438, %v1075, %v1077
        %v1079 = vsel %vm438, %v1077, %v1075
        %s1080 = scalar_lea.vmem %s6, 2
        %v1081 = vld [vmem:[%s1080] sm:$0x3]
        %v1083 = vlaneseq
        %v1084 = vshrl.u32 %v1083, 7
        %v1085 = vsub.s32 0, %v1084
        %v1086 = vrot.slane %v1081, %v1085
        %v1087 = vlaneseq
        %v1088 = vshrl.u32 %v1087, 7
        %v1089 = vsub.s32 1, %v1088
        %v1090 = vrot.slane %v1081, %v1089
        %v1093 = vmul.f32 %v1079, %v1086
        %v1094 = vmul.f32 %v1078, %v1090
        %1095 = vst [vmem:[#allocation2 + $0x10] sm:$0xff] %v1093
        %1096 = vst [vmem:[#allocation2 + $0x18] sm:$0xff] %v1094
        %1097 = vrot.lane.b32.xlu0 %v1050, 15
        %v1098 = vpop.permute.xlu0 %1097
        %1099 = vrot.lane.b32.xlu0 %v1051, 15
        %v1100 = vpop.permute.xlu0 %1099
        %v1101 = vsel %vm452, %v1098, %v1100
        %v1102 = vsel %vm452, %v1100, %v1098
        %s1103 = scalar_lea.vmem %s6, 4
        %v1104 = vld [vmem:[%s1103] sm:$0x3]
        %v1106 = vlaneseq
        %v1107 = vshrl.u32 %v1106, 7
        %v1108 = vsub.s32 0, %v1107
        %v1109 = vrot.slane %v1104, %v1108
        %v1110 = vlaneseq
        %v1111 = vshrl.u32 %v1110, 7
        %v1112 = vsub.s32 1, %v1111
        %v1113 = vrot.slane %v1104, %v1112
        %v1116 = vmul.f32 %v1102, %v1109
        %v1117 = vmul.f32 %v1101, %v1113
        %1118 = vst [vmem:[#allocation2 + $0x20] sm:$0xff] %v1116
        %1119 = vst [vmem:[#allocation2 + $0x28] sm:$0xff] %v1117
        %1120 = vrot.lane.b32.xlu0 %v1050, 1
        %v1121 = vpop.permute.xlu0 %1120
        %1122 = vrot.lane.b32.xlu0 %v1051, 1
        %v1123 = vpop.permute.xlu0 %1122
        %v1124 = vsel %vm466, %v1121, %v1123
        %v1125 = vsel %vm466, %v1123, %v1121
        %s1126 = scalar_lea.vmem %s6, 6
        %v1127 = vld [vmem:[%s1126] sm:$0x3]
        %v1129 = vlaneseq
        %v1130 = vshrl.u32 %v1129, 7
        %v1131 = vsub.s32 0, %v1130
        %v1132 = vrot.slane %v1127, %v1131
        %v1133 = vlaneseq
        %v1134 = vshrl.u32 %v1133, 7
        %v1135 = vsub.s32 1, %v1134
        %v1136 = vrot.slane %v1127, %v1135
        %v1139 = vmul.f32 %v1125, %v1132
        %v1140 = vmul.f32 %v1124, %v1136
        %1141 = vst [vmem:[#allocation2 + $0x30] sm:$0xff] %v1139
        %1142 = vst [vmem:[#allocation2 + $0x38] sm:$0xff] %v1140
        %1143 = vst [vmem:[#allocation2 + $0x40] sm:$0xff] %v1050
        %1144 = vst [vmem:[#allocation2 + $0x48] sm:$0xff] %v1051
        %1145 = vrot.lane.b32.xlu0 %v1050, 127
        %v1146 = vpop.permute.xlu0 %1145
        %1147 = vrot.lane.b32.xlu0 %v1051, 127
        %v1148 = vpop.permute.xlu0 %1147
        %v1149 = vsel %vm480, %v1146, %v1148
        %v1150 = vsel %vm480, %v1148, %v1146
        %s1151 = scalar_lea.vmem %s6, 10
        %v1152 = vld [vmem:[%s1151] sm:$0x3]
        %v1154 = vlaneseq
        %v1155 = vshrl.u32 %v1154, 7
        %v1156 = vsub.s32 0, %v1155
        %v1157 = vrot.slane %v1152, %v1156
        %v1158 = vlaneseq
        %v1159 = vshrl.u32 %v1158, 7
        %v1160 = vsub.s32 1, %v1159
        %v1161 = vrot.slane %v1152, %v1160
        %v1164 = vmul.f32 %v1149, %v1157
        %v1165 = vmul.f32 %v1150, %v1161
        %1166 = vst [vmem:[#allocation2 + $0x50] sm:$0xff] %v1164
        %1167 = vst [vmem:[#allocation2 + $0x58] sm:$0xff] %v1165
        %1168 = vrot.lane.b32.xlu0 %v1050, 113
        %v1169 = vpop.permute.xlu0 %1168
        %1170 = vrot.lane.b32.xlu0 %v1051, 113
        %v1171 = vpop.permute.xlu0 %1170
        %v1172 = vsel %vm494, %v1169, %v1171
        %v1173 = vsel %vm494, %v1171, %v1169
        %s1174 = scalar_lea.vmem %s6, 12
        %v1175 = vld [vmem:[%s1174] sm:$0x3]
        %v1177 = vlaneseq
        %v1178 = vshrl.u32 %v1177, 7
        %v1179 = vsub.s32 0, %v1178
        %v1180 = vrot.slane %v1175, %v1179
        %v1181 = vlaneseq
        %v1182 = vshrl.u32 %v1181, 7
        %v1183 = vsub.s32 1, %v1182
        %v1184 = vrot.slane %v1175, %v1183
        %v1187 = vmul.f32 %v1172, %v1180
        %v1188 = vmul.f32 %v1173, %v1184
        %1189 = vst [vmem:[#allocation2 + $0x60] sm:$0xff] %v1187
        %1190 = vst [vmem:[#allocation2 + $0x68] sm:$0xff] %v1188
        %1191 = vrot.lane.b32.xlu0 %v1050, 112
        %v1192 = vpop.permute.xlu0 %1191
        %1193 = vrot.lane.b32.xlu0 %v1051, 112
        %v1194 = vpop.permute.xlu0 %1193
        %v1195 = vsel %vm508, %v1192, %v1194
        %v1196 = vsel %vm508, %v1194, %v1192
        %s1197 = scalar_lea.vmem %s6, 14
        %v1198 = vld [vmem:[%s1197] sm:$0x3]
        %v1200 = vlaneseq
        %v1201 = vshrl.u32 %v1200, 7
        %v1202 = vsub.s32 0, %v1201
        %v1203 = vrot.slane %v1198, %v1202
        %v1204 = vlaneseq
        %v1205 = vshrl.u32 %v1204, 7
        %v1206 = vsub.s32 1, %v1205
        %v1207 = vrot.slane %v1198, %v1206
        %v1210 = vmul.f32 %v1195, %v1203
        %v1211 = vmul.f32 %v1196, %v1207
        %1212 = vst [vmem:[#allocation2 + $0x70] sm:$0xff] %v1210
        %1213 = vst [vmem:[#allocation2 + $0x78] sm:$0xff] %v1211
        %1214 = vrot.lane.b32.xlu0 %v1050, 111
        %v1215 = vpop.permute.xlu0 %1214
        %1216 = vrot.lane.b32.xlu0 %v1051, 111
        %v1217 = vpop.permute.xlu0 %1216
        %v1218 = vsel %vm522, %v1215, %v1217
        %v1219 = vsel %vm522, %v1217, %v1215
        %s1220 = scalar_lea.vmem %s6, 16
        %v1221 = vld [vmem:[%s1220] sm:$0x3]
        %v1223 = vlaneseq
        %v1224 = vshrl.u32 %v1223, 7
        %v1225 = vsub.s32 0, %v1224
        %v1226 = vrot.slane %v1221, %v1225
        %v1227 = vlaneseq
        %v1228 = vshrl.u32 %v1227, 7
        %v1229 = vsub.s32 1, %v1228
        %v1230 = vrot.slane %v1221, %v1229
        %v1233 = vmul.f32 %v1218, %v1226
        %v1234 = vmul.f32 %v1219, %v1230
        %1235 = vst [vmem:[#allocation2 + $0x80] sm:$0xff] %v1233
        %1236 = vst [vmem:[#allocation2 + $0x88] sm:$0xff] %v1234
        %v1237 = vlaneseq
        %vm1238 = vcmp.ge.s32.totalorder %v1237, 0
        %vm1239 = vcmp.lt.s32.totalorder %v1237, 256
        %vm1240 = vmand %vm1238, %vm1239
        %s1241 = scalar_lea.vmem [#allocation2], 144
        %1242 = vst.msk [vmem:[%s1241] ss:$8 sm:$0x3] %vm1240, 1.0
        %1243 = vst.msk [vmem:[%s1241] ss:$8 sm:$0x0] %vm1240, 1.0
        %v1244 = vld [vmem:[#allocation8] sm:$0xff]
        %v1245 = vld [vmem:[#allocation2] sm:$0xff]
        %v1246 = vld [vmem:[#allocation2 + $0x8] sm:$0xff]
        %v1247 = vld [vmem:[#allocation2 + $0x10] sm:$0xff]
        %v1248 = vld [vmem:[#allocation2 + $0x18] sm:$0xff]
        %v1249 = vld [vmem:[#allocation2 + $0x20] sm:$0xff]
        %v1250 = vld [vmem:[#allocation2 + $0x28] sm:$0xff]
        %v1251 = vld [vmem:[#allocation2 + $0x30] sm:$0xff]
        %v1252 = vld [vmem:[#allocation2 + $0x38] sm:$0xff]
        %v1253 = vld [vmem:[#allocation2 + $0x40] sm:$0xff]
        %v1254 = vld [vmem:[#allocation2 + $0x48] sm:$0xff]
        %v1255 = vld [vmem:[#allocation2 + $0x50] sm:$0xff]
        %v1256 = vld [vmem:[#allocation2 + $0x58] sm:$0xff]
        %v1257 = vld [vmem:[#allocation2 + $0x60] sm:$0xff]
        %v1258 = vld [vmem:[#allocation2 + $0x68] sm:$0xff]
        %v1259 = vld [vmem:[#allocation2 + $0x70] sm:$0xff]
        %v1260 = vld [vmem:[#allocation2 + $0x78] sm:$0xff]
        %v1261 = vld [vmem:[#allocation2 + $0x80] sm:$0xff]
        %v1262 = vld [vmem:[#allocation2 + $0x88] sm:$0xff]
        %v1263 = vld [vmem:[#allocation2 + $0x90] sm:$0x1]
        %v1264 = vld [vmem:[#allocation2 + $0x98] sm:$0x1]
        %vm1265 = vcmask 596992
        %v1267 = vsel %vm1265, %v1244, 0
        %vm1269 = vcmask 1040384
        %v1271 = vsel %vm1269, %v1263, 0
        %v1274 = vsel %vm1269, %v1264, 0
        %1276 = vmatprep.subr.mxu0 %v1246
        %1277 = vmatpush1.msra.mxu0 %v1245
        %1278 = vmatprep.subr.mxu0 %v1248
        %1279 = vmatpush1.msra.mxu0 %v1247
        %1280 = vmatprep.subr.mxu0 %v1250
        %1281 = vmatpush1.msra.mxu0 %v1249
        %1282 = vmatprep.subr.mxu0 %v1252
        %1283 = vmatpush1.msra.mxu0 %v1251
        %1284 = vmatprep.subr.mxu0 %v1254
        %1285 = vmatpush1.msra.mxu0 %v1253
        %1286 = vmatprep.subr.mxu0 %v1256
        %1287 = vmatpush1.msra.mxu0 %v1255
        %1288 = vmatprep.subr.mxu0 %v1258
        %1289 = vmatpush1.msra.mxu0 %v1257
        %1290 = vmatprep.subr.mxu0 %v1260
        %1291 = vmatpush1.msra.mxu0 %v1259
        %1292 = vmatprep.subr.mxu0 %v1262
        %1293 = vmatpush1.msra.mxu0 %v1261
        %1294 = vmatprep.subr.mxu0 %v1274
        %1295 = vmatpush1.msra.mxu0 %v1271
        %1296 = vmatprep.subr.mxu0 0.0
        %1297 = vmatpush1.msra.mxu0 0.0
        %1298 = vmatprep.subr.mxu0 0.0
        %1299 = vmatpush1.msra.mxu0 0.0
        %1300 = vmatprep.subr.mxu0 0.0
        %1301 = vmatpush1.msra.mxu0 0.0
        %1302 = vmatprep.subr.mxu0 0.0
        %1303 = vmatpush1.msra.mxu0 0.0
        %1304 = vmatprep.subr.mxu0 0.0
        %1305 = vmatpush1.msra.mxu0 0.0
        %1306 = vmatprep.subr.mxu0 0.0
        %1307 = vmatpush1.msra.mxu0 0.0
        %1308 = vmatprep.subr.mxu0 0.0
        %1309 = vmatpush1.msra.mxu0 0.0
        %1310 = vmatprep.subr.mxu0 0.0
        %1311 = vmatpush1.msra.mxu0 0.0
        %1312 = vmatprep.subr.mxu0 0.0
        %1313 = vmatpush1.msra.mxu0 0.0
        %1314 = vmatprep.subr.mxu0 0.0
        %1315 = vmatpush1.msra.mxu0 0.0
        %1316 = vmatprep.subr.mxu0 0.0
        %1317 = vmatpush1.msra.mxu0 0.0
        %1318 = vmatprep.subr.mxu0 0.0
        %1319 = vmatpush1.msra.mxu0 0.0
        %1320 = vmatprep.subr.mxu0 0.0
        %1321 = vmatpush1.msra.mxu0 0.0
        %1322 = vmatprep.subr.mxu0 0.0
        %1323 = vmatpush1.msra.mxu0 0.0
        %1324 = vmatprep.subr.mxu0 0.0
        %1325 = vmatpush1.msra.mxu0 0.0
        %1326 = vmatprep.subr.mxu0 0.0
        %1327 = vmatpush1.msra.mxu0 0.0
        %1328 = vmatprep.subr.mxu0 0.0
        %1329 = vmatpush1.msra.mxu0 0.0
        %1330 = vmatprep.subr.mxu0 0.0
        %1331 = vmatpush1.msra.mxu0 0.0
        %1332 = vmatprep.subr.mxu0 0.0
        %1333 = vmatpush1.msra.mxu0 0.0
        %1334 = vmatprep.subr.mxu0 0.0
        %1335 = vmatpush1.msra.mxu0 0.0
        %1336 = vmatprep.subr.mxu0 0.0
        %1337 = vmatpush1.msra.mxu0 0.0
        %1338 = vmatprep.subr.mxu0 0.0
        %1339 = vmatpush1.msra.mxu0 0.0
        %1340 = vmatprep.mubr.f32.mxu0 0.0
        %1341 = vmatmul.mubr.f32.gmra.mrb[0].mxu0 %v1267
        %v1342 = vpop.f32.mrb[0].mxu0
        %v1343 = vadd.f32 0.0, %v1342
        %v1344 = vpop.f32.mrb[0].mxu0
        %v1345 = vadd.f32 0.0, %v1344
        %1346 = vdwg.mxu0
        %v1347 = vmax.f32 %v1343, 0.0
        %v1348 = vmax.f32 %v1345, 0.0
        %1349 = vst [vmem:[%s321] sm:$0xff] %v1347
        %1350 = vst [vmem:[%s321 + $0x8] sm:$0xff] %v1348
        %s1351 = sand.u32 %s185, 1
        %s1352 = scalar_lea.sflag [#allocation5], %s1351
        %s1353 = sand.u32 %s185, 1
        %s1354 = smul.addr %s1353, 16
        %s1355 = scalar_lea.vmem [#allocation9], %s1354
        // Predicated region
        $region61: #{tpu_custom_call.1} parent=47 // pred_check
          %p1356 = pneg %p195
        $region62: #{tpu_custom_call.1} parent=47 // pred_check_branch
          %1358 = sbr.rel (%p1356) target = $region64
        $region63: #{tpu_custom_call.1} parent=47 // pred_region
          %s1360 = ssub.s32 256, 256
          %1361 = vsyncadd %s1352, %s1360
          %s1362 = smul.addr %s25, 2
          %s1363 = smul.addr %s1362, 128
          %s1364 = scalar_lea.hbm %s7, %s1363
          %s1366 = sshll.u32 %s1355, 4
          %s1367 = int_to_ptr.vmem [resolvable:$true] %s1366
          %1369 = dma.vmem_to_hbm [thread:$0]  %s1367, 256, %s1364, %s1352
        $region64: #{tpu_custom_call.1} parent=47 // pred_fallthru
          _
      $region48: #{tpu_custom_call.1} parent=5 // pred_fallthru
        _
      %p1370 = scmp.le.s32.totalorder 2, %s20
      // Predicated region
      $region65: #{tpu_custom_call.1} parent=5 // pred_check
        %p1371 = pneg %p1370
      $region66: #{tpu_custom_call.1} parent=5 // pred_check_branch
        %1373 = sbr.rel (%p1371) target = $region68
      $region67: #{tpu_custom_call.1} parent=5 // pred_region
        %s1374 = ssub.s32 %s20, 2
        // Predicated region
        $region69: #{tpu_custom_call.1} parent=67 // pred_check
          %p1375 = pneg %p201
        $region70: #{tpu_custom_call.1} parent=67 // pred_check_branch
          %1377 = sbr.rel (%p1375) target = $region72
        $region71: #{tpu_custom_call.1} parent=67 // pred_region
          %s1378 = sand.u32 %s186, 1
          %s1379 = scalar_lea.sflag [#allocation5], %s1378
          %s1380 = sand.u32 %s186, 1
          %s1381 = smul.addr %s1380, 16
          %s1382 = scalar_lea.vmem [#allocation9], %s1381
          %1383 = dma.done %s1379, 256
        $region72: #{tpu_custom_call.1} parent=67 // pred_fallthru
          _
      $region68: #{tpu_custom_call.1} parent=5 // pred_fallthru
        _
    $region6: #{tpu_custom_call.1} parent=1 // loop_footer
      %s24 = sadd.s32 1, %s20
    $region7: #{tpu_custom_call.1} parent=1 // loop_footer_branch
      %19 = sbr.rel target = $region3
    $region8: #{tpu_custom_call.1} parent=1 // loop_exit
      _
    %1384 = vsyncpa [#allocation4], 1
    %s1385 = scalar_lea.sflag [#allocation4], 1
    %1386 = vsyncpa %s1385, 1
    %1387 = vsyncpa [#allocation7], 1
    %1388 = vsyncpa [#allocation5], 1
    %s1389 = scalar_lea.sflag [#allocation5], 1
    %1390 = vsyncpa %s1389, 1

</llo_original>
